<compile_context>
chip_gen: v7x
topology: tpu7x:2x2x1
jax: 0.10.0
libtpu: 0.0.40
codegen_flags: <defaults>
</compile_context>

<pallas_src>
import numpy as np
import jax
import jax.numpy as jnp
from jax import lax
from jax.experimental import pallas as pl
from jax.experimental.pallas import tpu as pltpu

G = 8         # rotation-group size (the "height" axis of the (1,3) convs)
K = 3         # neighbours per group element == conv kernel width
C_IN = 32     # input / output channels of the whole network
C_HID = 256   # hidden channels
C_MID = 512   # middle channels of the residual block
C_PAD = 128   # lane-padded output width of Conv_out (sliced back to C_IN in the wrapper)

# synthetic neighbour shifts: nei[g] = ((g+0)%8, (g+1)%8, (g+3)%8)
# TODO(synk): the real Nei_Index_in_SO3_ordered_3.npy / Rotation_8.npy files are unavailable;
# a deterministic synthetic rotation-group neighbour table is used instead (Rgroup itself is
# not used in the forward pass).  If the real table is not a pure rotation, replace the
# pltpu.roll gather below with a generic gather path.
NEI_SHIFTS = (0, 1, 3)


# ------------------------------- kernel --------------------------------------

def parti_kernel(x0_ref, xcat0_ref,
                 w0_ref, b0_ref,
                 s1_ref, t1_ref, w1_hbm, b1_ref,
                 s2_ref, t2_ref, w2_hbm, b2_ref,
                 s3_ref, t3_ref, w3_ref, b3_ref,
                 eqv_ref, inv_ref,
                 w1_vmem, w2_vmem, dma_sem):
    BG = x0_ref.shape[0]
    B = BG // G

    # Kick off the two big weight DMAs immediately; conv_in + BN + gather run underneath them.
    w1_cp = pltpu.make_async_copy(w1_hbm, w1_vmem, dma_sem.at[0])
    w2_cp = pltpu.make_async_copy(w2_hbm, w2_vmem, dma_sem.at[1])
    w1_cp.start()
    w2_cp.start()

    def conv(xcat_bf16, w_bf16, b_f32):
        # one fused (1,3) conv stage: [B*G, 3*C_in] @ [3*C_in, C_out] on the MXU (bf16 in, f32 acc)
        return jnp.dot(xcat_bf16, w_bf16, preferred_element_type=jnp.float32) + b_f32

    def bn_relu(x, s_ref, t_ref):
        # eval-mode BatchNorm folded to per-channel scale/shift, then ReLU (f32 VPU)
        return jnp.maximum(x * s_ref[...] + t_ref[...], 0.0)

    def gather_cat(x):
        """x: [G*B, C] f32, group-major.  Returns [G*B, 3*C] bf16 with taps (g, g+1, g+3).

        In group-major layout tap s is one full-array sublane rotation by (G-s)*B rows
        (pltpu.roll == XLU rotate, separate VLIW slot from the VPU/MXU work).  Each tap is
        cast to bf16 before the lane concat to halve the copy traffic.
        """
        taps = []
        for s in NEI_SHIFTS:
            t = x if s == 0 else pltpu.roll(x, shift=(G - s) * B, axis=0)
            taps.append(t.astype(jnp.bfloat16))
        return jnp.concatenate(taps, axis=-1)

    # Conv_in: Conv2d(32, 256, (1,3)) -- input gather/concat was done in the wrapper
    h = conv(xcat0_ref[...], w0_ref[...], b0_ref[...])                       # [G*B, 256]

    # Residual_Comb_Conv(256, 512, 256): no shortcut conv (in_dim == out_dim)
    g1 = gather_cat(bn_relu(h, s1_ref, t1_ref))                              # [G*B, 768] bf16
    w1_cp.wait()                                                             # w1 needed now
    h1 = conv(g1, w1_vmem[...], b1_ref[...])                                 # [G*B, 512]

    g2 = gather_cat(bn_relu(h1, s2_ref, t2_ref))                             # [G*B, 1536] bf16
    w2_cp.wait()                                                             # w2 needed now
    h2 = conv(g2, w2_vmem[...], b2_ref[...])                                 # [G*B, 256]
    h = h2 + h                                                               # residual

    # Conv_out: Comb_Conv(256, 32) lane-padded to C_PAD outputs, plus the global residual
    # with the (lane-padded) raw input.  Padded lanes stay exactly zero.
    eqv = conv(gather_cat(bn_relu(h, s3_ref, t3_ref)), w3_ref[...], b3_ref[...]) + x0_ref[...]

    # invariant branch: mean over the group axis (leading axis in group-major layout),
    # then L2-normalise over channels.  One reduce + one lane-dense store.
    inv = jnp.mean(eqv.reshape(G, B, C_PAD), axis=0)                         # [B, C_PAD]
    inv_ref[...] = inv * jnp.minimum(
        lax.rsqrt(jnp.sum(inv * inv, axis=-1, keepdims=True)), 1e4)

    # equivariant branch: L2-normalise over channels.
    # note: x / max(||x||, 1e-4) == x * min(rsqrt(||x||^2), 1e4)
    eqv_ref[...] = eqv * jnp.minimum(
        lax.rsqrt(jnp.sum(eqv * eqv, axis=-1, keepdims=True)), 1e4)


# ------------------------------- wrapper --------------------------------------

@jax.jit
def parti_forward(group_feat, params, nei):
    """group_feat: [B, 32, G] (PyTorch layout).  Returns {'inv': [B,32], 'eqv': [B,32,G]}."""
    B = group_feat.shape[0]
    feats = jnp.transpose(group_feat, (0, 2, 1)).astype(jnp.float32)         # [B, G, 32]
    feats_gm = jnp.transpose(feats, (1, 0, 2))                               # [G, B, 32] group-major

    # lane-padded raw input for the global residual (padded lanes zero)
    x0p = jnp.zeros((G * B, C_PAD), jnp.float32).at[:, :C_IN].set(
        feats_gm.reshape(G * B, C_IN))
    # stage-0 gather + tap concat done here (generic w.r.t. the runtime `nei` table);
    # it only feeds the first matmul so it is cast to bf16 directly.
    xcat0 = jnp.transpose(feats[:, nei, :], (1, 0, 2, 3)).reshape(
        G * B, K * C_IN).astype(jnp.bfloat16)                                # [G*B, 96]

    args = (x0p, xcat0,
            params['w0c'], params['b0'],
            params['s1'], params['t1'], params['w1c'], params['b1'],
            params['s2'], params['t2'], params['w2c'], params['b2'],
            params['s3'], params['t3'], params['w3c'], params['b3p'])

    vmem = pl.BlockSpec(memory_space=pltpu.MemorySpace.VMEM)
    hbm = pl.BlockSpec(memory_space=pl.ANY)       # big weights: DMA'd manually inside the kernel
    in_specs = [vmem, vmem,
                vmem, vmem,
                vmem, vmem, hbm, vmem,
                vmem, vmem, hbm, vmem,
                vmem, vmem, vmem, vmem]

    flops = 2 * B * G * K * (C_IN * C_HID + C_HID * C_MID + C_MID * C_HID + C_HID * C_PAD)
    w_bytes = 2 * K * (C_IN * C_HID + C_HID * C_MID + C_MID * C_HID + C_HID * C_PAD)
    act_bytes = 4 * B * G * (3 * C_PAD) + 2 * B * G * K * C_IN

    eqv2d, inv = pl.pallas_call(
        parti_kernel,
        out_shape=(jax.ShapeDtypeStruct((G * B, C_PAD), jnp.float32),
                   jax.ShapeDtypeStruct((B, C_PAD), jnp.float32)),
        in_specs=in_specs,
        out_specs=(vmem, vmem),
        scratch_shapes=[pltpu.VMEM((K * C_HID, C_MID), jnp.bfloat16),   # w1 landing buffer
                        pltpu.VMEM((K * C_MID, C_HID), jnp.bfloat16),   # w2 landing buffer
                        pltpu.SemaphoreType.DMA((2,))],
        cost_estimate=pl.CostEstimate(flops=flops,
                                      transcendentals=B * G + B,
                                      bytes_accessed=w_bytes + act_bytes),
    )(*args)

    eqv = jnp.transpose(eqv2d[:, :C_IN].reshape(G, B, C_IN), (1, 2, 0))      # -> [B, 32, G]
    return {'inv': inv[:, :C_IN], 'eqv': eqv}


# ----------------------- deterministic parameter setup -----------------------

def _fold_bn(key, c):
    """Eval-mode BatchNorm2d folded into per-channel scale/shift."""
    kg, kb, km, kv = jax.random.split(key, 4)
    gamma = 1.0 + 0.1 * jax.random.normal(kg, (c,))
    beta = 0.1 * jax.random.normal(kb, (c,))
    mean = 0.1 * jax.random.normal(km, (c,))
    var = jnp.abs(1.0 + 0.1 * jax.random.normal(kv, (c,)))
    scale = gamma / jnp.sqrt(var + 1e-5)
    shift = beta - mean * scale
    return (scale[None, :].astype(jnp.float32), shift[None, :].astype(jnp.float32))


def _conv(key, c_in, c_out):
    """Conv2d(c_in, c_out, (1,3)) weights stored as W[k, c_in, c_out] (= torch w[o,c,0,k])."""
    kw, kb = jax.random.split(key)
    w = (jax.random.normal(kw, (K, c_in, c_out)) / np.sqrt(K * c_in)).astype(jnp.float32)
    b = (0.05 * jax.random.normal(kb, (1, c_out))).astype(jnp.float32)
    return w, b


def make_params(key):
    nei = np.array([[(g + s) % G for s in NEI_SHIFTS] for g in range(G)], dtype=np.int32)

    ks = jax.random.split(key, 8)
    w0, b0 = _conv(ks[0], C_IN, C_HID)        # Conv_in
    s1, t1 = _fold_bn(ks[1], C_HID)           # residual block, BN before first conv
    w1, b1 = _conv(ks[2], C_HID, C_MID)
    s2, t2 = _fold_bn(ks[3], C_MID)           # residual block, BN before second conv
    w2, b2 = _conv(ks[4], C_MID, C_HID)
    s3, t3 = _fold_bn(ks[5], C_HID)           # Conv_out BN
    w3, b3 = _conv(ks[6], C_HID, C_IN)

    def cat_bf16(w):   # [K, Cin, Cout] -> [K*Cin, Cout] bf16, tap-major rows
        return w.reshape(K * w.shape[1], w.shape[2]).astype(jnp.bfloat16)

    # Conv_out zero-padded to C_PAD output channels -> lane-dense last matmul + eqv stores
    w3p = jnp.zeros((K * C_HID, C_PAD), jnp.float32).at[:, :C_IN].set(
        w3.reshape(K * C_HID, C_IN))
    b3p = jnp.zeros((1, C_PAD), jnp.float32).at[:, :C_IN].set(b3)

    params = dict(
        # f32 originals (used by the pure-JAX reference)
        w0=w0, b0=b0, s1=s1, t1=t1, w1=w1, b1=b1,
        s2=s2, t2=t2, w2=w2, b2=b2, s3=s3, t3=t3, w3=w3, b3=b3,
        # fused, bf16 kernel weights (+ padded Conv_out)
        w0c=cat_bf16(w0), w1c=cat_bf16(w1), w2c=cat_bf16(w2),
        w3c=w3p.astype(jnp.bfloat16), b3p=b3p)
    return params, jnp.asarray(nei)


# --------------------------- pure-JAX reference ------------------------------

def ref_forward(group_feat, params, nei):
    feats = jnp.transpose(group_feat, (0, 2, 1)).astype(jnp.float32)   # [B, G, C]

    def comb(x, w, b, st=None):
        xg = x[:, nei, :]                                  # [B, G, K, C_in]
        if st is not None:
            s, t = st
            xg = jnp.maximum(xg * s[0] + t[0], 0.0)
        return jnp.einsum('bgkc,kco->bgo', xg, w) + b[0]

    h = comb(feats, params['w0'], params['b0'])
    h1 = comb(h, params['w1'], params['b1'], (params['s1'], params['t1']))
    h2 = comb(h1, params['w2'], params['b2'], (params['s2'], params['t2']))
    h = h2 + h
    eqv = comb(h, params['w3'], params['b3'], (params['s3'], params['t3'])) + feats
    inv = jnp.mean(eqv, axis=1)
    eqv = eqv / jnp.maximum(jnp.linalg.norm(eqv, axis=2, keepdims=True), 1e-4)
    inv = inv / jnp.maximum(jnp.linalg.norm(inv, axis=1, keepdims=True), 1e-4)
    return {'inv': inv, 'eqv': jnp.transpose(eqv, (0, 2, 1))}


if __name__ == "__main__":
    key = jax.random.PRNGKey(0)
    kp, kx = jax.random.split(key)
    params, nei = make_params(kp)

    B = 2
    group_feat = jax.random.normal(kx, (B, C_IN, G), dtype=jnp.float32)   # PyTorch layout [B, 32, 8]

    out = parti_forward(group_feat, params, nei)
    jax.block_until_ready(out)

    # NOTE: matmul inputs are bf16 (inference-style); 5e-2 tolerance absorbs ~1e-2 bf16 drift
    # along the residual chain relative to the f32 reference.
    ref = ref_forward(group_feat, params, nei)
    assert out['eqv'].shape == (B, C_IN, G) and out['inv'].shape == (B, C_IN)
    assert float(jnp.max(jnp.abs(out['eqv'] - ref['eqv']))) < 5e-2
    assert float(jnp.max(jnp.abs(out['inv'] - ref['inv']))) < 5e-2
    print("KERNEL_OK")
</pallas_src>

<mosaic_0001>
module attributes {stable_mosaic.version = 11 : i64} {
  func.func @parti_kernel(%arg0: memref<16x128xf32, #tpu.memory_space<vmem>>, %arg1: memref<16x96xbf16, #tpu.memory_space<vmem>>, %arg2: memref<96x256xbf16, #tpu.memory_space<vmem>>, %arg3: memref<1x256xf32, #tpu.memory_space<vmem>>, %arg4: memref<1x256xf32, #tpu.memory_space<vmem>>, %arg5: memref<1x256xf32, #tpu.memory_space<vmem>>, %arg6: memref<768x512xbf16, #tpu.memory_space<any>>, %arg7: memref<1x512xf32, #tpu.memory_space<vmem>>, %arg8: memref<1x512xf32, #tpu.memory_space<vmem>>, %arg9: memref<1x512xf32, #tpu.memory_space<vmem>>, %arg10: memref<1536x256xbf16, #tpu.memory_space<any>>, %arg11: memref<1x256xf32, #tpu.memory_space<vmem>>, %arg12: memref<1x256xf32, #tpu.memory_space<vmem>>, %arg13: memref<1x256xf32, #tpu.memory_space<vmem>>, %arg14: memref<768x128xbf16, #tpu.memory_space<vmem>>, %arg15: memref<1x128xf32, #tpu.memory_space<vmem>>, %arg16: memref<16x128xf32, #tpu.memory_space<vmem>>, %arg17: memref<2x128xf32, #tpu.memory_space<vmem>>, %arg18: memref<768x512xbf16, #tpu.memory_space<vmem>>, %arg19: memref<1536x256xbf16, #tpu.memory_space<vmem>>, %arg20: memref<2x!tpu.dma_semaphore, #tpu.memory_space<semaphore_mem>>) attributes {dimension_semantics = [], scalar_prefetch = 0 : i64, scratch_operands = 3 : i64, tpu.core_type = #tpu.core_type<tc>} {
    %c0_i32 = arith.constant 0 : i32
    %0 = tpu.memref_slice %arg20[%c0_i32] : memref<2x!tpu.dma_semaphore, #tpu.memory_space<semaphore_mem>> -> memref<1x!tpu.dma_semaphore, #tpu.memory_space<semaphore_mem>>
    %1 = tpu.memref_squeeze %0 : memref<1x!tpu.dma_semaphore, #tpu.memory_space<semaphore_mem>> -> memref<!tpu.dma_semaphore, #tpu.memory_space<semaphore_mem>>
    tpu.enqueue_dma source(%arg6 : memref<768x512xbf16, #tpu.memory_space<any>>) target(%arg18 : memref<768x512xbf16, #tpu.memory_space<vmem>>) target_semaphore(%1 : memref<!tpu.dma_semaphore, #tpu.memory_space<semaphore_mem>>)
    %c1_i32 = arith.constant 1 : i32
    %2 = tpu.memref_slice %arg20[%c1_i32] : memref<2x!tpu.dma_semaphore, #tpu.memory_space<semaphore_mem>> -> memref<1x!tpu.dma_semaphore, #tpu.memory_space<semaphore_mem>>
    %3 = tpu.memref_squeeze %2 : memref<1x!tpu.dma_semaphore, #tpu.memory_space<semaphore_mem>> -> memref<!tpu.dma_semaphore, #tpu.memory_space<semaphore_mem>>
    tpu.enqueue_dma source(%arg10 : memref<1536x256xbf16, #tpu.memory_space<any>>) target(%arg19 : memref<1536x256xbf16, #tpu.memory_space<vmem>>) target_semaphore(%3 : memref<!tpu.dma_semaphore, #tpu.memory_space<semaphore_mem>>)
    %c0 = arith.constant 0 : index
    %c0_0 = arith.constant 0 : index
    %4 = vector.load %arg1[%c0, %c0_0] : memref<16x96xbf16, #tpu.memory_space<vmem>>, vector<16x96xbf16>
    %c0_1 = arith.constant 0 : index
    %c0_2 = arith.constant 0 : index
    %5 = vector.load %arg2[%c0_1, %c0_2] : memref<96x256xbf16, #tpu.memory_space<vmem>>, vector<96x256xbf16>
    %c0_3 = arith.constant 0 : index
    %c0_4 = arith.constant 0 : index
    %6 = vector.load %arg3[%c0_3, %c0_4] : memref<1x256xf32, #tpu.memory_space<vmem>>, vector<1x256xf32>
    %cst = arith.constant dense<0.000000e+00> : vector<16x256xf32>
    %7 = tpu.matmul %4, %5, %cst {dimension_numbers = #tpu.dot_dimension_numbers<[1], [0], [0], [1], [0, 0, 1, 1], [], []>} : vector<16x96xbf16>, vector<96x256xbf16>, vector<16x256xf32> -> vector<16x256xf32>
    %8 = vector.broadcast %6 : vector<1x256xf32> to vector<16x256xf32>
    %9 = arith.addf %7, %8 : vector<16x256xf32>
    %c0_5 = arith.constant 0 : index
    %c0_6 = arith.constant 0 : index
    %10 = vector.load %arg4[%c0_5, %c0_6] : memref<1x256xf32, #tpu.memory_space<vmem>>, vector<1x256xf32>
    %11 = vector.broadcast %10 : vector<1x256xf32> to vector<16x256xf32>
    %12 = arith.mulf %9, %11 : vector<16x256xf32>
    %c0_7 = arith.constant 0 : index
    %c0_8 = arith.constant 0 : index
    %13 = vector.load %arg5[%c0_7, %c0_8] : memref<1x256xf32, #tpu.memory_space<vmem>>, vector<1x256xf32>
    %14 = vector.broadcast %13 : vector<1x256xf32> to vector<16x256xf32>
    %15 = arith.addf %12, %14 : vector<16x256xf32>
    %cst_9 = arith.constant 0.000000e+00 : f32
    %16 = vector.broadcast %cst_9 : f32 to vector<16x256xf32>
    %17 = arith.maximumf %15, %16 : vector<16x256xf32>
    %18 = arith.truncf %17 : vector<16x256xf32> to vector<16x256xbf16>
    %c14_i32 = arith.constant 14 : i32
    %19 = tpu.dynamic_rotate %17 by %c14_i32 dim 0 : vector<16x256xf32>, i32 -> vector<16x256xf32>
    %20 = arith.truncf %19 : vector<16x256xf32> to vector<16x256xbf16>
    %c10_i32 = arith.constant 10 : i32
    %21 = tpu.dynamic_rotate %17 by %c10_i32 dim 0 : vector<16x256xf32>, i32 -> vector<16x256xf32>
    %22 = arith.truncf %21 : vector<16x256xf32> to vector<16x256xbf16>
    %23 = tpu.concatenate %18, %20, %22 in 1 : vector<16x256xbf16>, vector<16x256xbf16>, vector<16x256xbf16> -> vector<16x768xbf16>
    %c0_i32_10 = arith.constant 0 : i32
    %24 = tpu.memref_slice %arg20[%c0_i32_10] : memref<2x!tpu.dma_semaphore, #tpu.memory_space<semaphore_mem>> -> memref<1x!tpu.dma_semaphore, #tpu.memory_space<semaphore_mem>>
    %25 = tpu.memref_squeeze %24 : memref<1x!tpu.dma_semaphore, #tpu.memory_space<semaphore_mem>> -> memref<!tpu.dma_semaphore, #tpu.memory_space<semaphore_mem>>
    tpu.wait_dma2 semaphore(%25 : memref<!tpu.dma_semaphore, #tpu.memory_space<semaphore_mem>>) src(%arg6 : memref<768x512xbf16, #tpu.memory_space<any>>) dst(%arg18 : memref<768x512xbf16, #tpu.memory_space<vmem>>)
    %c0_11 = arith.constant 0 : index
    %c0_12 = arith.constant 0 : index
    %26 = vector.load %arg18[%c0_11, %c0_12] : memref<768x512xbf16, #tpu.memory_space<vmem>>, vector<768x512xbf16>
    %c0_13 = arith.constant 0 : index
    %c0_14 = arith.constant 0 : index
    %27 = vector.load %arg7[%c0_13, %c0_14] : memref<1x512xf32, #tpu.memory_space<vmem>>, vector<1x512xf32>
    %cst_15 = arith.constant dense<0.000000e+00> : vector<16x512xf32>
    %28 = tpu.matmul %23, %26, %cst_15 {dimension_numbers = #tpu.dot_dimension_numbers<[1], [0], [0], [1], [0, 0, 1, 1], [], []>} : vector<16x768xbf16>, vector<768x512xbf16>, vector<16x512xf32> -> vector<16x512xf32>
    %29 = vector.broadcast %27 : vector<1x512xf32> to vector<16x512xf32>
    %30 = arith.addf %28, %29 : vector<16x512xf32>
    %c0_16 = arith.constant 0 : index
    %c0_17 = arith.constant 0 : index
    %31 = vector.load %arg8[%c0_16, %c0_17] : memref<1x512xf32, #tpu.memory_space<vmem>>, vector<1x512xf32>
    %32 = vector.broadcast %31 : vector<1x512xf32> to vector<16x512xf32>
    %33 = arith.mulf %30, %32 : vector<16x512xf32>
    %c0_18 = arith.constant 0 : index
    %c0_19 = arith.constant 0 : index
    %34 = vector.load %arg9[%c0_18, %c0_19] : memref<1x512xf32, #tpu.memory_space<vmem>>, vector<1x512xf32>
    %35 = vector.broadcast %34 : vector<1x512xf32> to vector<16x512xf32>
    %36 = arith.addf %33, %35 : vector<16x512xf32>
    %cst_20 = arith.constant 0.000000e+00 : f32
    %37 = vector.broadcast %cst_20 : f32 to vector<16x512xf32>
    %38 = arith.maximumf %36, %37 : vector<16x512xf32>
    %39 = arith.truncf %38 : vector<16x512xf32> to vector<16x512xbf16>
    %c14_i32_21 = arith.constant 14 : i32
    %40 = tpu.dynamic_rotate %38 by %c14_i32_21 dim 0 : vector<16x512xf32>, i32 -> vector<16x512xf32>
    %41 = arith.truncf %40 : vector<16x512xf32> to vector<16x512xbf16>
    %c10_i32_22 = arith.constant 10 : i32
    %42 = tpu.dynamic_rotate %38 by %c10_i32_22 dim 0 : vector<16x512xf32>, i32 -> vector<16x512xf32>
    %43 = arith.truncf %42 : vector<16x512xf32> to vector<16x512xbf16>
    %44 = tpu.concatenate %39, %41, %43 in 1 : vector<16x512xbf16>, vector<16x512xbf16>, vector<16x512xbf16> -> vector<16x1536xbf16>
    %c1_i32_23 = arith.constant 1 : i32
    %45 = tpu.memref_slice %arg20[%c1_i32_23] : memref<2x!tpu.dma_semaphore, #tpu.memory_space<semaphore_mem>> -> memref<1x!tpu.dma_semaphore, #tpu.memory_space<semaphore_mem>>
    %46 = tpu.memref_squeeze %45 : memref<1x!tpu.dma_semaphore, #tpu.memory_space<semaphore_mem>> -> memref<!tpu.dma_semaphore, #tpu.memory_space<semaphore_mem>>
    tpu.wait_dma2 semaphore(%46 : memref<!tpu.dma_semaphore, #tpu.memory_space<semaphore_mem>>) src(%arg10 : memref<1536x256xbf16, #tpu.memory_space<any>>) dst(%arg19 : memref<1536x256xbf16, #tpu.memory_space<vmem>>)
    %c0_24 = arith.constant 0 : index
    %c0_25 = arith.constant 0 : index
    %47 = vector.load %arg19[%c0_24, %c0_25] : memref<1536x256xbf16, #tpu.memory_space<vmem>>, vector<1536x256xbf16>
    %c0_26 = arith.constant 0 : index
    %c0_27 = arith.constant 0 : index
    %48 = vector.load %arg11[%c0_26, %c0_27] : memref<1x256xf32, #tpu.memory_space<vmem>>, vector<1x256xf32>
    %cst_28 = arith.constant dense<0.000000e+00> : vector<16x256xf32>
    %49 = tpu.matmul %44, %47, %cst_28 {dimension_numbers = #tpu.dot_dimension_numbers<[1], [0], [0], [1], [0, 0, 1, 1], [], []>} : vector<16x1536xbf16>, vector<1536x256xbf16>, vector<16x256xf32> -> vector<16x256xf32>
    %50 = vector.broadcast %48 : vector<1x256xf32> to vector<16x256xf32>
    %51 = arith.addf %49, %50 : vector<16x256xf32>
    %52 = arith.addf %51, %9 : vector<16x256xf32>
    %c0_29 = arith.constant 0 : index
    %c0_30 = arith.constant 0 : index
    %53 = vector.load %arg12[%c0_29, %c0_30] : memref<1x256xf32, #tpu.memory_space<vmem>>, vector<1x256xf32>
    %54 = vector.broadcast %53 : vector<1x256xf32> to vector<16x256xf32>
    %55 = arith.mulf %52, %54 : vector<16x256xf32>
    %c0_31 = arith.constant 0 : index
    %c0_32 = arith.constant 0 : index
    %56 = vector.load %arg13[%c0_31, %c0_32] : memref<1x256xf32, #tpu.memory_space<vmem>>, vector<1x256xf32>
    %57 = vector.broadcast %56 : vector<1x256xf32> to vector<16x256xf32>
    %58 = arith.addf %55, %57 : vector<16x256xf32>
    %cst_33 = arith.constant 0.000000e+00 : f32
    %59 = vector.broadcast %cst_33 : f32 to vector<16x256xf32>
    %60 = arith.maximumf %58, %59 : vector<16x256xf32>
    %61 = arith.truncf %60 : vector<16x256xf32> to vector<16x256xbf16>
    %c14_i32_34 = arith.constant 14 : i32
    %62 = tpu.dynamic_rotate %60 by %c14_i32_34 dim 0 : vector<16x256xf32>, i32 -> vector<16x256xf32>
    %63 = arith.truncf %62 : vector<16x256xf32> to vector<16x256xbf16>
    %c10_i32_35 = arith.constant 10 : i32
    %64 = tpu.dynamic_rotate %60 by %c10_i32_35 dim 0 : vector<16x256xf32>, i32 -> vector<16x256xf32>
    %65 = arith.truncf %64 : vector<16x256xf32> to vector<16x256xbf16>
    %66 = tpu.concatenate %61, %63, %65 in 1 : vector<16x256xbf16>, vector<16x256xbf16>, vector<16x256xbf16> -> vector<16x768xbf16>
    %c0_36 = arith.constant 0 : index
    %c0_37 = arith.constant 0 : index
    %67 = vector.load %arg14[%c0_36, %c0_37] : memref<768x128xbf16, #tpu.memory_space<vmem>>, vector<768x128xbf16>
    %c0_38 = arith.constant 0 : index
    %c0_39 = arith.constant 0 : index
    %68 = vector.load %arg15[%c0_38, %c0_39] : memref<1x128xf32, #tpu.memory_space<vmem>>, vector<1x128xf32>
    %cst_40 = arith.constant dense<0.000000e+00> : vector<16x128xf32>
    %69 = tpu.matmul %66, %67, %cst_40 {dimension_numbers = #tpu.dot_dimension_numbers<[1], [0], [0], [1], [0, 0, 1, 1], [], []>} : vector<16x768xbf16>, vector<768x128xbf16>, vector<16x128xf32> -> vector<16x128xf32>
    %70 = vector.broadcast %68 : vector<1x128xf32> to vector<16x128xf32>
    %71 = arith.addf %69, %70 : vector<16x128xf32>
    %c0_41 = arith.constant 0 : index
    %c0_42 = arith.constant 0 : index
    %72 = vector.load %arg0[%c0_41, %c0_42] : memref<16x128xf32, #tpu.memory_space<vmem>>, vector<16x128xf32>
    %73 = arith.addf %71, %72 : vector<16x128xf32>
    %74 = vector.shape_cast %73 : vector<16x128xf32> to vector<8x2x128xf32>
    %cst_43 = arith.constant dense<0.000000e+00> : vector<2x128xf32>
    %75 = vector.multi_reduction <add>, %74, %cst_43 [0] : vector<8x2x128xf32> to vector<2x128xf32>
    %cst_44 = arith.constant 8.000000e+00 : f32
    %76 = vector.broadcast %cst_44 : f32 to vector<2x128xf32>
    %77 = arith.divf %75, %76 : vector<2x128xf32>
    %78 = arith.mulf %77, %77 : vector<2x128xf32>
    %cst_45 = arith.constant dense<0.000000e+00> : vector<2xf32>
    %79 = vector.multi_reduction <add>, %78, %cst_45 [1] : vector<2x128xf32> to vector<2xf32>
    %80 = vector.shape_cast %79 : vector<2xf32> to vector<2x1xf32>
    %81 = math.rsqrt %80 : vector<2x1xf32>
    %cst_46 = arith.constant 1.000000e+04 : f32
    %82 = vector.broadcast %cst_46 : f32 to vector<2x1xf32>
    %83 = arith.minimumf %81, %82 : vector<2x1xf32>
    %84 = vector.broadcast %83 : vector<2x1xf32> to vector<2x128xf32>
    %85 = arith.mulf %77, %84 : vector<2x128xf32>
    %c0_47 = arith.constant 0 : index
    %c0_48 = arith.constant 0 : index
    %86 = vector.load %arg17[%c0_47, %c0_48] : memref<2x128xf32, #tpu.memory_space<vmem>>, vector<2x128xf32>
    tpu.vector_store %arg17[%c0_47, %c0_48], %85 {strides = array<i32>} : memref<2x128xf32, #tpu.memory_space<vmem>>, vector<2x128xf32>,
    %87 = arith.mulf %73, %73 : vector<16x128xf32>
    %cst_49 = arith.constant dense<0.000000e+00> : vector<16xf32>
    %88 = vector.multi_reduction <add>, %87, %cst_49 [1] : vector<16x128xf32> to vector<16xf32>
    %89 = vector.shape_cast %88 : vector<16xf32> to vector<16x1xf32>
    %90 = math.rsqrt %89 : vector<16x1xf32>
    %cst_50 = arith.constant 1.000000e+04 : f32
    %91 = vector.broadcast %cst_50 : f32 to vector<16x1xf32>
    %92 = arith.minimumf %90, %91 : vector<16x1xf32>
    %93 = vector.broadcast %92 : vector<16x1xf32> to vector<16x128xf32>
    %94 = arith.mulf %73, %93 : vector<16x128xf32>
    %c0_51 = arith.constant 0 : index
    %c0_52 = arith.constant 0 : index
    %95 = vector.load %arg16[%c0_51, %c0_52] : memref<16x128xf32, #tpu.memory_space<vmem>>, vector<16x128xf32>
    tpu.vector_store %arg16[%c0_51, %c0_52], %94 {strides = array<i32>} : memref<16x128xf32, #tpu.memory_space<vmem>>, vector<16x128xf32>,
    return
  }
}

</mosaic_0001>

<llo_original>
// kernel: parti_forward.1
$region0: #{parti_forward.1}
  #allocation0 [shape = 'u32[]', space=smem, size = 0x4, offset = 0x4, fixed_abs, tag = 'smem constant byte address 0x4 - core index']
  #allocation1 [shape = 'u32[144,128]{1,0:T(1,128)}', space=vmem, size = 0x12000, scoped, tag = 'internal scratch']
  #allocation2 [shape = 'bf16[768,512]{1,0:T(16,128)(2,1)}', space=vmem, size = 0xc0000, scoped, tag = 'scratch operand']
  #allocation3 [shape = 'bf16[1536,256]{1,0:T(16,128)(2,1)}', space=vmem, size = 0xc0000, scoped, tag = 'scratch operand']
  #allocation4 [shape = 's32[2]{0}', space=sflag, size = 0x8, scoped, tag = 'scratch operand']
  #allocation9 [shape = 's32[]', space=sflag, size = 0x4, offset = 0, fixed_abs, tag = 'sflag constant byte address 0x0 - dummy sync flag']
  #allocation11 [shape = 's32[]', space=sflag, size = 0x4, offset = 0, fixed_abs, tag = 'sflag constant byte address 0x0 - dummy sync flag']
  %s0 = inlined_call_operand.vmem [shape: f32[16,128], index: 0, kind: input, shape index: {}]
  %s1 = inlined_call_operand.vmem [shape: bf16[16,96], index: 1, kind: input, shape index: {}]
  %s2 = inlined_call_operand.vmem [shape: bf16[96,256], index: 2, kind: input, shape index: {}]
  %s3 = inlined_call_operand.vmem [shape: f32[1,256], index: 3, kind: input, shape index: {}]
  %s4 = inlined_call_operand.vmem [shape: f32[1,256], index: 4, kind: input, shape index: {}]
  %s5 = inlined_call_operand.vmem [shape: f32[1,256], index: 5, kind: input, shape index: {}]
  %s6 = inlined_call_operand.hbm [shape: bf16[768,512], index: 6, kind: input, shape index: {}]
  %s7 = inlined_call_operand.vmem [shape: f32[1,512], index: 7, kind: input, shape index: {}]
  %s8 = inlined_call_operand.vmem [shape: f32[1,512], index: 8, kind: input, shape index: {}]
  %s9 = inlined_call_operand.vmem [shape: f32[1,512], index: 9, kind: input, shape index: {}]
  %s10 = inlined_call_operand.hbm [shape: bf16[1536,256], index: 10, kind: input, shape index: {}]
  %s11 = inlined_call_operand.vmem [shape: f32[1,256], index: 11, kind: input, shape index: {}]
  %s12 = inlined_call_operand.vmem [shape: f32[1,256], index: 12, kind: input, shape index: {}]
  %s13 = inlined_call_operand.vmem [shape: f32[1,256], index: 13, kind: input, shape index: {}]
  %s14 = inlined_call_operand.hbm [shape: bf16[768,128], index: 14, kind: input, shape index: {}]
  %s15 = inlined_call_operand.vmem [shape: f32[1,128], index: 15, kind: input, shape index: {}]
  %s16 = inlined_call_operand.vmem [shape: f32[16,128], index: 16, kind: output, shape index: {0}]
  %s17 = inlined_call_operand.hbm [shape: f32[2,128], index: 17, kind: output, shape index: {1}]
  %18 = xla_tuple %s16, %s17
  %s19 = sld [smem:[#allocation0]]
  $region78: #{parti_forward.1} parent=0
    _
  %s21 = ssub.s32 1, %s19
  %s22 = scalar_select 0, %s21, %s19
  $region1: #{parti_forward.1} parent=0
    #allocation5 [shape = 'u8[196608]{0}', space=vmem, size = 0x30000, scoped, tag = 'input window, operand 14, single buffered']
    #allocation6 [shape = 's32[1]{0}', space=sflag, size = 0x4, scoped, tag = 'scoped memory for parti_forward.1']
    #allocation7 [shape = 's32[1]{0}', space=sflag, size = 0x4, scoped, tag = 'scoped memory for parti_forward.1']
    #allocation8 [shape = 'u8[1024]{0}', space=vmem, size = 0x400, scoped, tag = 'output window, operand 1, single buffered']
    #allocation10 [shape = 'u32[9]{0}', space=smem, size = 0x24, scoped, tag = 'DMA stride descriptor']
    #allocation12 [shape = 'u32[9]{0}', space=smem, size = 0x24, scoped, tag = 'DMA stride descriptor']
    %23 = vsyncpa [#allocation6], 0
    %24 = vsyncpa [#allocation7], 0
    // Predicated region
    $region2: #{parti_forward.1} parent=1 // pred_check
      _
    $region3: #{parti_forward.1} parent=1 // pred_check_branch
      %26 = sbr.rel (0) target = $region5
    $region4: #{parti_forward.1} parent=1 // pred_region
      _
    $region5: #{parti_forward.1} parent=1 // pred_fallthru
      _
    // Predicated region
    $region6: #{parti_forward.1} parent=1 // pred_check
      _
    $region7: #{parti_forward.1} parent=1 // pred_check_branch
      %28 = sbr.rel (0) target = $region9
    $region8: #{parti_forward.1} parent=1 // pred_region
      _
    $region9: #{parti_forward.1} parent=1 // pred_fallthru
      _
    // Predicated region
    $region10: #{parti_forward.1} parent=1 // pred_check
      _
    $region11: #{parti_forward.1} parent=1 // pred_check_branch
      %30 = sbr.rel (0) target = $region13
    $region12: #{parti_forward.1} parent=1 // pred_region
      _
    $region13: #{parti_forward.1} parent=1 // pred_fallthru
      _
    // Predicated region
    $region14: #{parti_forward.1} parent=1 // pred_check
      _
    $region15: #{parti_forward.1} parent=1 // pred_check_branch
      %32 = sbr.rel (0) target = $region17
    $region16: #{parti_forward.1} parent=1 // pred_region
      _
    $region17: #{parti_forward.1} parent=1 // pred_fallthru
      _
    // Predicated region
    $region18: #{parti_forward.1} parent=1 // pred_check
      _
    $region19: #{parti_forward.1} parent=1 // pred_check_branch
      %34 = sbr.rel (0) target = $region21
    $region20: #{parti_forward.1} parent=1 // pred_region
      _
    $region21: #{parti_forward.1} parent=1 // pred_fallthru
      _
    // Predicated region
    $region22: #{parti_forward.1} parent=1 // pred_check
      _
    $region23: #{parti_forward.1} parent=1 // pred_check_branch
      %36 = sbr.rel (0) target = $region25
    $region24: #{parti_forward.1} parent=1 // pred_region
      _
    $region25: #{parti_forward.1} parent=1 // pred_fallthru
      _
    // Predicated region
    $region26: #{parti_forward.1} parent=1 // pred_check
      _
    $region27: #{parti_forward.1} parent=1 // pred_check_branch
      %38 = sbr.rel (0) target = $region29
    $region28: #{parti_forward.1} parent=1 // pred_region
      _
    $region29: #{parti_forward.1} parent=1 // pred_fallthru
      _
    // Predicated region
    $region30: #{parti_forward.1} parent=1 // pred_check
      _
    $region31: #{parti_forward.1} parent=1 // pred_check_branch
      %40 = sbr.rel (0) target = $region33
    $region32: #{parti_forward.1} parent=1 // pred_region
      _
    $region33: #{parti_forward.1} parent=1 // pred_fallthru
      _
    // Predicated region
    $region34: #{parti_forward.1} parent=1 // pred_check
      _
    $region35: #{parti_forward.1} parent=1 // pred_check_branch
      %42 = sbr.rel (0) target = $region37
    $region36: #{parti_forward.1} parent=1 // pred_region
      _
    $region37: #{parti_forward.1} parent=1 // pred_fallthru
      _
    // Predicated region
    $region38: #{parti_forward.1} parent=1 // pred_check
      _
    $region39: #{parti_forward.1} parent=1 // pred_check_branch
      %44 = sbr.rel (0) target = $region41
    $region40: #{parti_forward.1} parent=1 // pred_region
      _
    $region41: #{parti_forward.1} parent=1 // pred_fallthru
      _
    // Predicated region
    $region42: #{parti_forward.1} parent=1 // pred_check
      _
    $region43: #{parti_forward.1} parent=1 // pred_check_branch
      %46 = sbr.rel (0) target = $region45
    $region44: #{parti_forward.1} parent=1 // pred_region
      _
    $region45: #{parti_forward.1} parent=1 // pred_fallthru
      _
    // Predicated region
    $region46: #{parti_forward.1} parent=1 // pred_check
      _
    $region47: #{parti_forward.1} parent=1 // pred_check_branch
      %48 = sbr.rel (0) target = $region49
    $region48: #{parti_forward.1} parent=1 // pred_region
      _
    $region49: #{parti_forward.1} parent=1 // pred_fallthru
      _
    // Predicated region
    $region50: #{parti_forward.1} parent=1 // pred_check
      _
    $region51: #{parti_forward.1} parent=1 // pred_check_branch
      %50 = sbr.rel (0) target = $region53
    $region52: #{parti_forward.1} parent=1 // pred_region
      %s52 = ssub.s32 6144, 6144
      %53 = vsyncadd [#allocation6], %s52
      %s54 = sshll.u32 [#allocation5], 4
      %s55 = int_to_ptr.vmem [resolvable:$true] %s54
      %60 = dma.hbm_to_vmem [thread:$0]  %s14, 6144, %s55, [#allocation6], 64, 64, 4
    $region53: #{parti_forward.1} parent=1 // pred_fallthru
      _
    // Predicated region
    $region54: #{parti_forward.1} parent=1 // pred_check
      _
    $region55: #{parti_forward.1} parent=1 // pred_check_branch
      %62 = sbr.rel (0) target = $region57
    $region56: #{parti_forward.1} parent=1 // pred_region
      _
    $region57: #{parti_forward.1} parent=1 // pred_fallthru
      _
    // Predicated region
    $region58: #{parti_forward.1} parent=1 // pred_check
      _
    $region59: #{parti_forward.1} parent=1 // pred_check_branch
      %64 = sbr.rel (0) target = $region61
    $region60: #{parti_forward.1} parent=1 // pred_region
      %65 = dma.done [#allocation6], 6144
    $region61: #{parti_forward.1} parent=1 // pred_fallthru
      _
    %s68 = sshll.u32 1, 14
    %s69 = sxor.u32 4294967295, %s68
    %s71 = sld [smem:[#allocation0]]
    %s72 = sadd.s32 2, %s71
    %s74 = sshll.u32 7, 26
    %s75 = sxor.u32 4294967295, %s74
    %s76 = sand.u32 0, %s75
    %s77 = sshll.u32 %s72, 26
    %s78 = sor.u32 %s76, %s77
    %s79 = sshll.u32 [#allocation2], 4
    %s80 = int_to_ptr.vmem [resolvable:$true] %s79
    %83 = sst [smem:[#allocation10]] 512
    %s84 = scalar_lea.smem [#allocation10], 1
    %85 = sst [smem:[%s84]] 512
    %s86 = scalar_lea.smem [#allocation10], 2
    %87 = sst [smem:[%s86]] 4
    %s88 = scalar_lea.smem [#allocation10], 3
    %89 = sst [smem:[%s88]] 64
    %s90 = scalar_lea.smem [#allocation10], 4
    %91 = sst [smem:[%s90]] 128
    %s92 = scalar_lea.smem [#allocation10], 5
    %93 = sst [smem:[%s92]] 2
    %s94 = scalar_lea.smem [#allocation10], 6
    %95 = sst [smem:[%s94]] 256
    %s96 = scalar_lea.smem [#allocation10], 7
    %97 = sst [smem:[%s96]] 64
    %s98 = scalar_lea.smem [#allocation10], 8
    %99 = sst [smem:[%s98]] 4
    %101 = dma.general %s6, 24576, %s80, [#allocation4], [#allocation9], [#allocation10], %s78, 0
    %s102 = scalar_lea.sflag [#allocation4], 1
    %s104 = sshll.u32 1, 14
    %s105 = sxor.u32 4294967295, %s104
    %s107 = sadd.s32 2, %s71
    %s109 = sshll.u32 7, 26
    %s110 = sxor.u32 4294967295, %s109
    %s111 = sand.u32 0, %s110
    %s112 = sshll.u32 %s107, 26
    %s113 = sor.u32 %s111, %s112
    %s114 = sshll.u32 [#allocation3], 4
    %s115 = int_to_ptr.vmem [resolvable:$true] %s114
    %118 = sst [smem:[#allocation12]] 256
    %s119 = scalar_lea.smem [#allocation12], 1
    %120 = sst [smem:[%s119]] 256
    %s121 = scalar_lea.smem [#allocation12], 2
    %122 = sst [smem:[%s121]] 2
    %s123 = scalar_lea.smem [#allocation12], 3
    %124 = sst [smem:[%s123]] 64
    %s125 = scalar_lea.smem [#allocation12], 4
    %126 = sst [smem:[%s125]] 128
    %s127 = scalar_lea.smem [#allocation12], 5
    %128 = sst [smem:[%s127]] 2
    %s129 = scalar_lea.smem [#allocation12], 6
    %130 = sst [smem:[%s129]] 128
    %s131 = scalar_lea.smem [#allocation12], 7
    %132 = sst [smem:[%s131]] 64
    %s133 = scalar_lea.smem [#allocation12], 8
    %134 = sst [smem:[%s133]] 4
    %136 = dma.general %s10, 24576, %s115, %s102, [#allocation11], [#allocation12], %s113, 0
    %v137 = vld [vmem:[%s1] sm:$0xf]
    %v138 = vld [vmem:[%s1 + $0x4] sm:$0xf]
    %v139 = vld [vmem:[%s2] sm:$0xff]
    %v140 = vld [vmem:[%s2 + $0x8] sm:$0xff]
    %v141 = vld [vmem:[%s2 + $0x10] sm:$0xff]
    %v142 = vld [vmem:[%s2 + $0x18] sm:$0xff]
    %v143 = vld [vmem:[%s2 + $0x20] sm:$0xff]
    %v144 = vld [vmem:[%s2 + $0x28] sm:$0xff]
    %v145 = vld [vmem:[%s2 + $0x30] sm:$0xff]
    %v146 = vld [vmem:[%s2 + $0x38] sm:$0xff]
    %v147 = vld [vmem:[%s2 + $0x40] sm:$0xff]
    %v148 = vld [vmem:[%s2 + $0x48] sm:$0xff]
    %v149 = vld [vmem:[%s2 + $0x50] sm:$0xff]
    %v150 = vld [vmem:[%s2 + $0x58] sm:$0xff]
    %v151 = vld [vmem:[%s3] sm:$0x3]
    %v153 = vlaneseq
    %v154 = vshrl.u32 %v153, 7
    %v155 = vsub.s32 0, %v154
    %v156 = vrot.slane %v151, %v155
    %v157 = vlaneseq
    %v158 = vshrl.u32 %v157, 7
    %v159 = vsub.s32 1, %v158
    %v160 = vrot.slane %v151, %v159
    %v165 = vunpack.c.l.b16 %v137
    %v166 = vunpack.c.l.b16 %v138
    %v167 = vpack.c.b16 %v166, %v165
    %v180 = vunpack.c.l.b16 %v139
    %v181 = vunpack.c.h.b16 %v139
    %v182 = vunpack.c.l.b16 %v140
    %v183 = vunpack.c.h.b16 %v140
    %v184 = vunpack.c.l.b16 %v141
    %v185 = vunpack.c.h.b16 %v141
    %v186 = vunpack.c.l.b16 %v142
    %v187 = vunpack.c.h.b16 %v142
    %v188 = vunpack.c.l.b16 %v143
    %v189 = vunpack.c.h.b16 %v143
    %v190 = vunpack.c.l.b16 %v144
    %v191 = vunpack.c.h.b16 %v144
    %v192 = vunpack.c.l.b16 %v145
    %v193 = vunpack.c.h.b16 %v145
    %v194 = vunpack.c.l.b16 %v146
    %v195 = vunpack.c.h.b16 %v146
    %v196 = vunpack.c.l.b16 %v147
    %v197 = vunpack.c.h.b16 %v147
    %v198 = vunpack.c.l.b16 %v148
    %v199 = vunpack.c.h.b16 %v148
    %v200 = vunpack.c.l.b16 %v149
    %v201 = vunpack.c.h.b16 %v149
    %v202 = vunpack.c.l.b16 %v150
    %v203 = vunpack.c.h.b16 %v150
    %v204 = vpack.c.b16 %v182, %v180
    %v205 = vpack.c.b16 %v183, %v181
    %v206 = vpack.c.b16 %v186, %v184
    %v207 = vpack.c.b16 %v187, %v185
    %v208 = vpack.c.b16 %v190, %v188
    %v209 = vpack.c.b16 %v191, %v189
    %v210 = vpack.c.b16 %v194, %v192
    %v211 = vpack.c.b16 %v195, %v193
    %v212 = vpack.c.b16 %v198, %v196
    %v213 = vpack.c.b16 %v199, %v197
    %v214 = vpack.c.b16 %v202, %v200
    %v215 = vpack.c.b16 %v203, %v201
    %vm228 = vcmask 785408
    %v230 = vsel %vm228, %v167, 0
    %232 = vmatprep.subr.bf16.mxu0 %v205
    %233 = vmatpush1.bf16.msra.mxu0 %v204
    %234 = vmatprep.subr.bf16.mxu0 %v207
    %235 = vmatpush1.bf16.msra.mxu0 %v206
    %236 = vmatprep.subr.bf16.mxu0 %v209
    %237 = vmatpush1.bf16.msra.mxu0 %v208
    %238 = vmatprep.subr.bf16.mxu0 %v211
    %239 = vmatpush1.bf16.msra.mxu0 %v210
    %240 = vmatprep.subr.bf16.mxu0 %v213
    %241 = vmatpush1.bf16.msra.mxu0 %v212
    %242 = vmatprep.subr.bf16.mxu0 %v215
    %243 = vmatpush1.bf16.msra.mxu0 %v214
    %244 = vmatprep.subr.bf16.mxu0 0
    %245 = vmatpush1.bf16.msra.mxu0 0
    %246 = vmatprep.subr.bf16.mxu0 0
    %247 = vmatpush1.bf16.msra.mxu0 0
    %248 = vmatprep.subr.bf16.mxu0 0
    %249 = vmatpush1.bf16.msra.mxu0 0
    %250 = vmatprep.subr.bf16.mxu0 0
    %251 = vmatpush1.bf16.msra.mxu0 0
    %252 = vmatprep.subr.bf16.mxu0 0
    %253 = vmatpush1.bf16.msra.mxu0 0
    %254 = vmatprep.subr.bf16.mxu0 0
    %255 = vmatpush1.bf16.msra.mxu0 0
    %256 = vmatprep.subr.bf16.mxu0 0
    %257 = vmatpush1.bf16.msra.mxu0 0
    %258 = vmatprep.subr.bf16.mxu0 0
    %259 = vmatpush1.bf16.msra.mxu0 0
    %260 = vmatprep.subr.bf16.mxu0 0
    %261 = vmatpush1.bf16.msra.mxu0 0
    %262 = vmatprep.subr.bf16.mxu0 0
    %263 = vmatpush1.bf16.msra.mxu0 0
    %264 = vmatprep.mubr.bf16.mxu0 0
    %265 = vmatmul.mubr.bf16.gmra.mrb[0].mxu0 %v230
    %v266 = vpop.f32.mrb[0].mxu0
    %v267 = vadd.f32 %v156, %v266
    %v268 = vpop.f32.mrb[0].mxu0
    %v269 = vadd.f32 %v160, %v268
    %v270 = vpop.f32.mrb[0].mxu0
    %v271 = vadd.f32 %v156, %v270
    %v272 = vpop.f32.mrb[0].mxu0
    %v273 = vadd.f32 %v160, %v272
    %274 = vdwg.mxu0
    %v275 = vld [vmem:[%s4] sm:$0x3]
    %v277 = vlaneseq
    %v278 = vshrl.u32 %v277, 7
    %v279 = vsub.s32 0, %v278
    %v280 = vrot.slane %v275, %v279
    %v281 = vlaneseq
    %v282 = vshrl.u32 %v281, 7
    %v283 = vsub.s32 1, %v282
    %v284 = vrot.slane %v275, %v283
    %v287 = vmul.f32 %v267, %v280
    %v288 = vmul.f32 %v269, %v284
    %v289 = vmul.f32 %v271, %v280
    %v290 = vmul.f32 %v273, %v284
    %v291 = vld [vmem:[%s5] sm:$0x3]
    %v293 = vlaneseq
    %v294 = vshrl.u32 %v293, 7
    %v295 = vsub.s32 0, %v294
    %v296 = vrot.slane %v291, %v295
    %v297 = vlaneseq
    %v298 = vshrl.u32 %v297, 7
    %v299 = vsub.s32 1, %v298
    %v300 = vrot.slane %v291, %v299
    %v303 = vadd.f32 %v287, %v296
    %v304 = vadd.f32 %v288, %v300
    %v305 = vadd.f32 %v289, %v296
    %v306 = vadd.f32 %v290, %v300
    %v307 = vmax.f32 %v303, 0.0
    %v308 = vmax.f32 %v304, 0.0
    %v309 = vmax.f32 %v305, 0.0
    %v310 = vmax.f32 %v306, 0.0
    %v311 = vpack.c.bf16 %v309, %v307
    %v312 = vpack.c.bf16 %v310, %v308
    %v313 = vrot.slane %v307, 2
    %v314 = vrot.slane %v308, 2
    %v315 = vrot.slane %v309, 2
    %v316 = vrot.slane %v310, 2
    %v317 = vlaneseq
    %v318 = vshrl.u32 %v317, 7
    %vm319 = vcmp.lt.s32.totalorder %v318, 6
    %v320 = vsel %vm319, %v313, %v315
    %v321 = vsel %vm319, %v314, %v316
    %v322 = vsel %vm319, %v315, %v313
    %v323 = vsel %vm319, %v316, %v314
    %v324 = vpack.c.bf16 %v322, %v320
    %v325 = vpack.c.bf16 %v323, %v321
    %v326 = vrot.slane %v307, 6
    %v327 = vrot.slane %v308, 6
    %v328 = vrot.slane %v309, 6
    %v329 = vrot.slane %v310, 6
    %vm330 = vcmp.lt.s32.totalorder %v318, 2
    %v331 = vsel %vm330, %v326, %v328
    %v332 = vsel %vm330, %v327, %v329
    %v333 = vsel %vm330, %v328, %v326
    %v334 = vsel %vm330, %v329, %v327
    %v335 = vpack.c.bf16 %v333, %v331
    %v336 = vpack.c.bf16 %v334, %v332
    %s337 = smul.u32 4, 96
    %s338 = smul.u32 %s337, 4
    %s339 = sshll.u32 %s338, 4
    %340 = dma.done [#allocation4], %s339
    %v341 = vld [vmem:[#allocation2] sm:$0xff]
    %v342 = vld [vmem:[#allocation2 + $0x8] sm:$0xff]
    %v343 = vld [vmem:[#allocation2 + $0x10] sm:$0xff]
    %v344 = vld [vmem:[#allocation2 + $0x18] sm:$0xff]
    %v345 = vld [vmem:[#allocation2 + $0x20] sm:$0xff]
    %v346 = vld [vmem:[#allocation2 + $0x28] sm:$0xff]
    %v347 = vld [vmem:[#allocation2 + $0x30] sm:$0xff]
    %v348 = vld [vmem:[#allocation2 + $0x38] sm:$0xff]
    %v349 = vld [vmem:[#allocation2 + $0x40] sm:$0xff]
    %v350 = vld [vmem:[#allocation2 + $0x48] sm:$0xff]
    %v351 = vld [vmem:[#allocation2 + $0x50] sm:$0xff]
    %v352 = vld [vmem:[#allocation2 + $0x58] sm:$0xff]
    %v353 = vld [vmem:[#allocation2 + $0x60] sm:$0xff]
    %v354 = vld [vmem:[#allocation2 + $0x68] sm:$0xff]
    %v355 = vld [vmem:[#allocation2 + $0x70] sm:$0xff]
    %v356 = vld [vmem:[#allocation2 + $0x78] sm:$0xff]
    %v357 = vld [vmem:[#allocation2 + $0x80] sm:$0xff]
    %v358 = vld [vmem:[#allocation2 + $0x88] sm:$0xff]
    %v359 = vld [vmem:[#allocation2 + $0x90] sm:$0xff]
    %v360 = vld [vmem:[#allocation2 + $0x98] sm:$0xff]
    %v361 = vld [vmem:[#allocation2 + $0xa0] sm:$0xff]
    %v362 = vld [vmem:[#allocation2 + $0xa8] sm:$0xff]
    %v363 = vld [vmem:[#allocation2 + $0xb0] sm:$0xff]
    %v364 = vld [vmem:[#allocation2 + $0xb8] sm:$0xff]
    %v365 = vld [vmem:[#allocation2 + $0xc0] sm:$0xff]
    %v366 = vld [vmem:[#allocation2 + $0xc8] sm:$0xff]
    %v367 = vld [vmem:[#allocation2 + $0xd0] sm:$0xff]
    %v368 = vld [vmem:[#allocation2 + $0xd8] sm:$0xff]
    %v369 = vld [vmem:[#allocation2 + $0xe0] sm:$0xff]
    %v370 = vld [vmem:[#allocation2 + $0xe8] sm:$0xff]
    %v371 = vld [vmem:[#allocation2 + $0xf0] sm:$0xff]
    %v372 = vld [vmem:[#allocation2 + $0xf8] sm:$0xff]
    %v373 = vld [vmem:[#allocation2 + $0x100] sm:$0xff]
    %v374 = vld [vmem:[#allocation2 + $0x108] sm:$0xff]
    %v375 = vld [vmem:[#allocation2 + $0x110] sm:$0xff]
    %v376 = vld [vmem:[#allocation2 + $0x118] sm:$0xff]
    %v377 = vld [vmem:[#allocation2 + $0x120] sm:$0xff]
    %v378 = vld [vmem:[#allocation2 + $0x128] sm:$0xff]
    %v379 = vld [vmem:[#allocation2 + $0x130] sm:$0xff]
    %v380 = vld [vmem:[#allocation2 + $0x138] sm:$0xff]
    %v381 = vld [vmem:[#allocation2 + $0x140] sm:$0xff]
    %v382 = vld [vmem:[#allocation2 + $0x148] sm:$0xff]
    %v383 = vld [vmem:[#allocation2 + $0x150] sm:$0xff]
    %v384 = vld [vmem:[#allocation2 + $0x158] sm:$0xff]
    %v385 = vld [vmem:[#allocation2 + $0x160] sm:$0xff]
    %v386 = vld [vmem:[#allocation2 + $0x168] sm:$0xff]
    %v387 = vld [vmem:[#allocation2 + $0x170] sm:$0xff]
    %v388 = vld [vmem:[#allocation2 + $0x178] sm:$0xff]
    %v389 = vld [vmem:[#allocation2 + $0x180] sm:$0xff]
    %v390 = vld [vmem:[#allocation2 + $0x188] sm:$0xff]
    %v391 = vld [vmem:[#allocation2 + $0x190] sm:$0xff]
    %v392 = vld [vmem:[#allocation2 + $0x198] sm:$0xff]
    %v393 = vld [vmem:[#allocation2 + $0x1a0] sm:$0xff]
    %v394 = vld [vmem:[#allocation2 + $0x1a8] sm:$0xff]
    %v395 = vld [vmem:[#allocation2 + $0x1b0] sm:$0xff]
    %v396 = vld [vmem:[#allocation2 + $0x1b8] sm:$0xff]
    %v397 = vld [vmem:[#allocation2 + $0x1c0] sm:$0xff]
    %v398 = vld [vmem:[#allocation2 + $0x1c8] sm:$0xff]
    %v399 = vld [vmem:[#allocation2 + $0x1d0] sm:$0xff]
    %v400 = vld [vmem:[#allocation2 + $0x1d8] sm:$0xff]
    %v401 = vld [vmem:[#allocation2 + $0x1e0] sm:$0xff]
    %v402 = vld [vmem:[#allocation2 + $0x1e8] sm:$0xff]
    %v403 = vld [vmem:[#allocation2 + $0x1f0] sm:$0xff]
    %v404 = vld [vmem:[#allocation2 + $0x1f8] sm:$0xff]
    %v405 = vld [vmem:[#allocation2 + $0x200] sm:$0xff]
    %v406 = vld [vmem:[#allocation2 + $0x208] sm:$0xff]
    %v407 = vld [vmem:[#allocation2 + $0x210] sm:$0xff]
    %v408 = vld [vmem:[#allocation2 + $0x218] sm:$0xff]
    %v409 = vld [vmem:[#allocation2 + $0x220] sm:$0xff]
    %v410 = vld [vmem:[#allocation2 + $0x228] sm:$0xff]
    %v411 = vld [vmem:[#allocation2 + $0x230] sm:$0xff]
    %v412 = vld [vmem:[#allocation2 + $0x238] sm:$0xff]
    %v413 = vld [vmem:[#allocation2 + $0x240] sm:$0xff]
    %v414 = vld [vmem:[#allocation2 + $0x248] sm:$0xff]
    %v415 = vld [vmem:[#allocation2 + $0x250] sm:$0xff]
    %v416 = vld [vmem:[#allocation2 + $0x258] sm:$0xff]
    %v417 = vld [vmem:[#allocation2 + $0x260] sm:$0xff]
    %v418 = vld [vmem:[#allocation2 + $0x268] sm:$0xff]
    %v419 = vld [vmem:[#allocation2 + $0x270] sm:$0xff]
    %v420 = vld [vmem:[#allocation2 + $0x278] sm:$0xff]
    %v421 = vld [vmem:[#allocation2 + $0x280] sm:$0xff]
    %v422 = vld [vmem:[#allocation2 + $0x288] sm:$0xff]
    %v423 = vld [vmem:[#allocation2 + $0x290] sm:$0xff]
    %v424 = vld [vmem:[#allocation2 + $0x298] sm:$0xff]
    %v425 = vld [vmem:[#allocation2 + $0x2a0] sm:$0xff]
    %v426 = vld [vmem:[#allocation2 + $0x2a8] sm:$0xff]
    %v427 = vld [vmem:[#allocation2 + $0x2b0] sm:$0xff]
    %v428 = vld [vmem:[#allocation2 + $0x2b8] sm:$0xff]
    %v429 = vld [vmem:[#allocation2 + $0x2c0] sm:$0xff]
    %v430 = vld [vmem:[#allocation2 + $0x2c8] sm:$0xff]
    %v431 = vld [vmem:[#allocation2 + $0x2d0] sm:$0xff]
    %v432 = vld [vmem:[#allocation2 + $0x2d8] sm:$0xff]
    %v433 = vld [vmem:[#allocation2 + $0x2e0] sm:$0xff]
    %v434 = vld [vmem:[#allocation2 + $0x2e8] sm:$0xff]
    %v435 = vld [vmem:[#allocation2 + $0x2f0] sm:$0xff]
    %v436 = vld [vmem:[#allocation2 + $0x2f8] sm:$0xff]
    %v437 = vld [vmem:[#allocation2 + $0x300] sm:$0xff]
    %v438 = vld [vmem:[#allocation2 + $0x308] sm:$0xff]
    %v439 = vld [vmem:[#allocation2 + $0x310] sm:$0xff]
    %v440 = vld [vmem:[#allocation2 + $0x318] sm:$0xff]
    %v441 = vld [vmem:[#allocation2 + $0x320] sm:$0xff]
    %v442 = vld [vmem:[#allocation2 + $0x328] sm:$0xff]
    %v443 = vld [vmem:[#allocation2 + $0x330] sm:$0xff]
    %v444 = vld [vmem:[#allocation2 + $0x338] sm:$0xff]
    %v445 = vld [vmem:[#allocation2 + $0x340] sm:$0xff]
    %v446 = vld [vmem:[#allocation2 + $0x348] sm:$0xff]
    %v447 = vld [vmem:[#allocation2 + $0x350] sm:$0xff]
    %v448 = vld [vmem:[#allocation2 + $0x358] sm:$0xff]
    %v449 = vld [vmem:[#allocation2 + $0x360] sm:$0xff]
    %v450 = vld [vmem:[#allocation2 + $0x368] sm:$0xff]
    %v451 = vld [vmem:[#allocation2 + $0x370] sm:$0xff]
    %v452 = vld [vmem:[#allocation2 + $0x378] sm:$0xff]
    %v453 = vld [vmem:[#allocation2 + $0x380] sm:$0xff]
    %v454 = vld [vmem:[#allocation2 + $0x388] sm:$0xff]
    %v455 = vld [vmem:[#allocation2 + $0x390] sm:$0xff]
    %v456 = vld [vmem:[#allocation2 + $0x398] sm:$0xff]
    %v457 = vld [vmem:[#allocation2 + $0x3a0] sm:$0xff]
    %v458 = vld [vmem:[#allocation2 + $0x3a8] sm:$0xff]
    %v459 = vld [vmem:[#allocation2 + $0x3b0] sm:$0xff]
    %v460 = vld [vmem:[#allocation2 + $0x3b8] sm:$0xff]
    %v461 = vld [vmem:[#allocation2 + $0x3c0] sm:$0xff]
    %v462 = vld [vmem:[#allocation2 + $0x3c8] sm:$0xff]
    %v463 = vld [vmem:[#allocation2 + $0x3d0] sm:$0xff]
    %v464 = vld [vmem:[#allocation2 + $0x3d8] sm:$0xff]
    %v465 = vld [vmem:[#allocation2 + $0x3e0] sm:$0xff]
    %v466 = vld [vmem:[#allocation2 + $0x3e8] sm:$0xff]
    %v467 = vld [vmem:[#allocation2 + $0x3f0] sm:$0xff]
    %v468 = vld [vmem:[#allocation2 + $0x3f8] sm:$0xff]
    %v469 = vld [vmem:[#allocation2 + $0x400] sm:$0xff]
    %v470 = vld [vmem:[#allocation2 + $0x408] sm:$0xff]
    %v471 = vld [vmem:[#allocation2 + $0x410] sm:$0xff]
    %v472 = vld [vmem:[#allocation2 + $0x418] sm:$0xff]
    %v473 = vld [vmem:[#allocation2 + $0x420] sm:$0xff]
    %v474 = vld [vmem:[#allocation2 + $0x428] sm:$0xff]
    %v475 = vld [vmem:[#allocation2 + $0x430] sm:$0xff]
    %v476 = vld [vmem:[#allocation2 + $0x438] sm:$0xff]
    %v477 = vld [vmem:[#allocation2 + $0x440] sm:$0xff]
    %v478 = vld [vmem:[#allocation2 + $0x448] sm:$0xff]
    %v479 = vld [vmem:[#allocation2 + $0x450] sm:$0xff]
    %v480 = vld [vmem:[#allocation2 + $0x458] sm:$0xff]
    %v481 = vld [vmem:[#allocation2 + $0x460] sm:$0xff]
    %v482 = vld [vmem:[#allocation2 + $0x468] sm:$0xff]
    %v483 = vld [vmem:[#allocation2 + $0x470] sm:$0xff]
    %v484 = vld [vmem:[#allocation2 + $0x478] sm:$0xff]
    %v485 = vld [vmem:[#allocation2 + $0x480] sm:$0xff]
    %v486 = vld [vmem:[#allocation2 + $0x488] sm:$0xff]
    %v487 = vld [vmem:[#allocation2 + $0x490] sm:$0xff]
    %v488 = vld [vmem:[#allocation2 + $0x498] sm:$0xff]
    %v489 = vld [vmem:[#allocation2 + $0x4a0] sm:$0xff]
    %v490 = vld [vmem:[#allocation2 + $0x4a8] sm:$0xff]
    %v491 = vld [vmem:[#allocation2 + $0x4b0] sm:$0xff]
    %v492 = vld [vmem:[#allocation2 + $0x4b8] sm:$0xff]
    %v493 = vld [vmem:[#allocation2 + $0x4c0] sm:$0xff]
    %v494 = vld [vmem:[#allocation2 + $0x4c8] sm:$0xff]
    %v495 = vld [vmem:[#allocation2 + $0x4d0] sm:$0xff]
    %v496 = vld [vmem:[#allocation2 + $0x4d8] sm:$0xff]
    %v497 = vld [vmem:[#allocation2 + $0x4e0] sm:$0xff]
    %v498 = vld [vmem:[#allocation2 + $0x4e8] sm:$0xff]
    %v499 = vld [vmem:[#allocation2 + $0x4f0] sm:$0xff]
    %v500 = vld [vmem:[#allocation2 + $0x4f8] sm:$0xff]
    %v501 = vld [vmem:[#allocation2 + $0x500] sm:$0xff]
    %v502 = vld [vmem:[#allocation2 + $0x508] sm:$0xff]
    %v503 = vld [vmem:[#allocation2 + $0x510] sm:$0xff]
    %v504 = vld [vmem:[#allocation2 + $0x518] sm:$0xff]
    %v505 = vld [vmem:[#allocation2 + $0x520] sm:$0xff]
    %v506 = vld [vmem:[#allocation2 + $0x528] sm:$0xff]
    %v507 = vld [vmem:[#allocation2 + $0x530] sm:$0xff]
    %v508 = vld [vmem:[#allocation2 + $0x538] sm:$0xff]
    %v509 = vld [vmem:[#allocation2 + $0x540] sm:$0xff]
    %v510 = vld [vmem:[#allocation2 + $0x548] sm:$0xff]
    %v511 = vld [vmem:[#allocation2 + $0x550] sm:$0xff]
    %v512 = vld [vmem:[#allocation2 + $0x558] sm:$0xff]
    %v513 = vld [vmem:[#allocation2 + $0x560] sm:$0xff]
    %v514 = vld [vmem:[#allocation2 + $0x568] sm:$0xff]
    %v515 = vld [vmem:[#allocation2 + $0x570] sm:$0xff]
    %v516 = vld [vmem:[#allocation2 + $0x578] sm:$0xff]
    %v517 = vld [vmem:[#allocation2 + $0x580] sm:$0xff]
    %v518 = vld [vmem:[#allocation2 + $0x588] sm:$0xff]
    %v519 = vld [vmem:[#allocation2 + $0x590] sm:$0xff]
    %v520 = vld [vmem:[#allocation2 + $0x598] sm:$0xff]
    %v521 = vld [vmem:[#allocation2 + $0x5a0] sm:$0xff]
    %v522 = vld [vmem:[#allocation2 + $0x5a8] sm:$0xff]
    %v523 = vld [vmem:[#allocation2 + $0x5b0] sm:$0xff]
    %v524 = vld [vmem:[#allocation2 + $0x5b8] sm:$0xff]
    %v525 = vld [vmem:[#allocation2 + $0x5c0] sm:$0xff]
    %v526 = vld [vmem:[#allocation2 + $0x5c8] sm:$0xff]
    %v527 = vld [vmem:[#allocation2 + $0x5d0] sm:$0xff]
    %v528 = vld [vmem:[#allocation2 + $0x5d8] sm:$0xff]
    %v529 = vld [vmem:[#allocation2 + $0x5e0] sm:$0xff]
    %v530 = vld [vmem:[#allocation2 + $0x5e8] sm:$0xff]
    %v531 = vld [vmem:[#allocation2 + $0x5f0] sm:$0xff]
    %v532 = vld [vmem:[#allocation2 + $0x5f8] sm:$0xff]
    %v533 = vld [vmem:[%s7] sm:$0xf]
    %v535 = vlaneseq
    %v536 = vshrl.u32 %v535, 7
    %v537 = vsub.s32 0, %v536
    %v538 = vrot.slane %v533, %v537
    %v539 = vlaneseq
    %v540 = vshrl.u32 %v539, 7
    %v541 = vsub.s32 1, %v540
    %v542 = vrot.slane %v533, %v541
    %v543 = vlaneseq
    %v544 = vshrl.u32 %v543, 7
    %v545 = vsub.s32 2, %v544
    %v546 = vrot.slane %v533, %v545
    %v547 = vlaneseq
    %v548 = vshrl.u32 %v547, 7
    %v549 = vsub.s32 3, %v548
    %v550 = vrot.slane %v533, %v549
    %555 = vmatprep.subr.bf16.mxu0 %v342
    %556 = vmatpush1.bf16.msra.mxu0 %v341
    %557 = vmatprep.subr.bf16.mxu0 %v346
    %558 = vmatpush1.bf16.msra.mxu0 %v345
    %559 = vmatprep.subr.bf16.mxu0 %v350
    %560 = vmatpush1.bf16.msra.mxu0 %v349
    %561 = vmatprep.subr.bf16.mxu0 %v354
    %562 = vmatpush1.bf16.msra.mxu0 %v353
    %563 = vmatprep.subr.bf16.mxu0 %v358
    %564 = vmatpush1.bf16.msra.mxu0 %v357
    %565 = vmatprep.subr.bf16.mxu0 %v362
    %566 = vmatpush1.bf16.msra.mxu0 %v361
    %567 = vmatprep.subr.bf16.mxu0 %v366
    %568 = vmatpush1.bf16.msra.mxu0 %v365
    %569 = vmatprep.subr.bf16.mxu0 %v370
    %570 = vmatpush1.bf16.msra.mxu0 %v369
    %571 = vmatprep.subr.bf16.mxu0 %v374
    %572 = vmatpush1.bf16.msra.mxu0 %v373
    %573 = vmatprep.subr.bf16.mxu0 %v378
    %574 = vmatpush1.bf16.msra.mxu0 %v377
    %575 = vmatprep.subr.bf16.mxu0 %v382
    %576 = vmatpush1.bf16.msra.mxu0 %v381
    %577 = vmatprep.subr.bf16.mxu0 %v386
    %578 = vmatpush1.bf16.msra.mxu0 %v385
    %579 = vmatprep.subr.bf16.mxu0 %v390
    %580 = vmatpush1.bf16.msra.mxu0 %v389
    %581 = vmatprep.subr.bf16.mxu0 %v394
    %582 = vmatpush1.bf16.msra.mxu0 %v393
    %583 = vmatprep.subr.bf16.mxu0 %v398
    %584 = vmatpush1.bf16.msra.mxu0 %v397
    %585 = vmatprep.subr.bf16.mxu0 %v402
    %586 = vmatpush1.bf16.msra.mxu0 %v401
    %587 = vmatprep.mubr.bf16.mxu0 %v312
    %588 = vmatmul.mubr.bf16.gmra.mrb[0].mxu0 %v311
    %v589 = vpop.f32.mrb[0].mxu0
    %v590 = vadd.f32 %v538, %v589
    %v591 = vpop.f32.mrb[0].mxu0
    %v592 = vadd.f32 %v542, %v591
    %v593 = vpop.f32.mrb[0].mxu0
    %v594 = vadd.f32 %v538, %v593
    %v595 = vpop.f32.mrb[0].mxu0
    %v596 = vadd.f32 %v542, %v595
    %597 = vdwg.mxu0
    %598 = vmatprep.subr.bf16.mxu0 %v406
    %599 = vmatpush1.bf16.msra.mxu0 %v405
    %600 = vmatprep.subr.bf16.mxu0 %v410
    %601 = vmatpush1.bf16.msra.mxu0 %v409
    %602 = vmatprep.subr.bf16.mxu0 %v414
    %603 = vmatpush1.bf16.msra.mxu0 %v413
    %604 = vmatprep.subr.bf16.mxu0 %v418
    %605 = vmatpush1.bf16.msra.mxu0 %v417
    %606 = vmatprep.subr.bf16.mxu0 %v422
    %607 = vmatpush1.bf16.msra.mxu0 %v421
    %608 = vmatprep.subr.bf16.mxu0 %v426
    %609 = vmatpush1.bf16.msra.mxu0 %v425
    %610 = vmatprep.subr.bf16.mxu0 %v430
    %611 = vmatpush1.bf16.msra.mxu0 %v429
    %612 = vmatprep.subr.bf16.mxu0 %v434
    %613 = vmatpush1.bf16.msra.mxu0 %v433
    %614 = vmatprep.subr.bf16.mxu0 %v438
    %615 = vmatpush1.bf16.msra.mxu0 %v437
    %616 = vmatprep.subr.bf16.mxu0 %v442
    %617 = vmatpush1.bf16.msra.mxu0 %v441
    %618 = vmatprep.subr.bf16.mxu0 %v446
    %619 = vmatpush1.bf16.msra.mxu0 %v445
    %620 = vmatprep.subr.bf16.mxu0 %v450
    %621 = vmatpush1.bf16.msra.mxu0 %v449
    %622 = vmatprep.subr.bf16.mxu0 %v454
    %623 = vmatpush1.bf16.msra.mxu0 %v453
    %624 = vmatprep.subr.bf16.mxu0 %v458
    %625 = vmatpush1.bf16.msra.mxu0 %v457
    %626 = vmatprep.subr.bf16.mxu0 %v462
    %627 = vmatpush1.bf16.msra.mxu0 %v461
    %628 = vmatprep.subr.bf16.mxu0 %v466
    %629 = vmatpush1.bf16.msra.mxu0 %v465
    %630 = vmatprep.mubr.bf16.mxu0 %v325
    %631 = vmatmul.mubr.bf16.gmra.mrb[0].mxu0 %v324
    %v632 = vpop.f32.mrb[0].mxu0
    %v633 = vadd.f32 %v590, %v632
    %v634 = vpop.f32.mrb[0].mxu0
    %v635 = vadd.f32 %v592, %v634
    %v636 = vpop.f32.mrb[0].mxu0
    %v637 = vadd.f32 %v594, %v636
    %v638 = vpop.f32.mrb[0].mxu0
    %v639 = vadd.f32 %v596, %v638
    %640 = vdwg.mxu0
    %641 = vmatprep.subr.bf16.mxu0 %v470
    %642 = vmatpush1.bf16.msra.mxu0 %v469
    %643 = vmatprep.subr.bf16.mxu0 %v474
    %644 = vmatpush1.bf16.msra.mxu0 %v473
    %645 = vmatprep.subr.bf16.mxu0 %v478
    %646 = vmatpush1.bf16.msra.mxu0 %v477
    %647 = vmatprep.subr.bf16.mxu0 %v482
    %648 = vmatpush1.bf16.msra.mxu0 %v481
    %649 = vmatprep.subr.bf16.mxu0 %v486
    %650 = vmatpush1.bf16.msra.mxu0 %v485
    %651 = vmatprep.subr.bf16.mxu0 %v490
    %652 = vmatpush1.bf16.msra.mxu0 %v489
    %653 = vmatprep.subr.bf16.mxu0 %v494
    %654 = vmatpush1.bf16.msra.mxu0 %v493
    %655 = vmatprep.subr.bf16.mxu0 %v498
    %656 = vmatpush1.bf16.msra.mxu0 %v497
    %657 = vmatprep.subr.bf16.mxu0 %v502
    %658 = vmatpush1.bf16.msra.mxu0 %v501
    %659 = vmatprep.subr.bf16.mxu0 %v506
    %660 = vmatpush1.bf16.msra.mxu0 %v505
    %661 = vmatprep.subr.bf16.mxu0 %v510
    %662 = vmatpush1.bf16.msra.mxu0 %v509
    %663 = vmatprep.subr.bf16.mxu0 %v514
    %664 = vmatpush1.bf16.msra.mxu0 %v513
    %665 = vmatprep.subr.bf16.mxu0 %v518
    %666 = vmatpush1.bf16.msra.mxu0 %v517
    %667 = vmatprep.subr.bf16.mxu0 %v522
    %668 = vmatpush1.bf16.msra.mxu0 %v521
    %669 = vmatprep.subr.bf16.mxu0 %v526
    %670 = vmatpush1.bf16.msra.mxu0 %v525
    %671 = vmatprep.subr.bf16.mxu0 %v530
    %672 = vmatpush1.bf16.msra.mxu0 %v529
    %673 = vmatprep.mubr.bf16.mxu0 %v336
    %674 = vmatmul.mubr.bf16.gmra.mrb[0].mxu0 %v335
    %v675 = vpop.f32.mrb[0].mxu0
    %v676 = vadd.f32 %v633, %v675
    %v677 = vpop.f32.mrb[0].mxu0
    %v678 = vadd.f32 %v635, %v677
    %v679 = vpop.f32.mrb[0].mxu0
    %v680 = vadd.f32 %v637, %v679
    %v681 = vpop.f32.mrb[0].mxu0
    %v682 = vadd.f32 %v639, %v681
    %683 = vdwg.mxu0
    %684 = vmatprep.subr.bf16.mxu0 %v344
    %685 = vmatpush1.bf16.msra.mxu0 %v343
    %686 = vmatprep.subr.bf16.mxu0 %v348
    %687 = vmatpush1.bf16.msra.mxu0 %v347
    %688 = vmatprep.subr.bf16.mxu0 %v352
    %689 = vmatpush1.bf16.msra.mxu0 %v351
    %690 = vmatprep.subr.bf16.mxu0 %v356
    %691 = vmatpush1.bf16.msra.mxu0 %v355
    %692 = vmatprep.subr.bf16.mxu0 %v360
    %693 = vmatpush1.bf16.msra.mxu0 %v359
    %694 = vmatprep.subr.bf16.mxu0 %v364
    %695 = vmatpush1.bf16.msra.mxu0 %v363
    %696 = vmatprep.subr.bf16.mxu0 %v368
    %697 = vmatpush1.bf16.msra.mxu0 %v367
    %698 = vmatprep.subr.bf16.mxu0 %v372
    %699 = vmatpush1.bf16.msra.mxu0 %v371
    %700 = vmatprep.subr.bf16.mxu0 %v376
    %701 = vmatpush1.bf16.msra.mxu0 %v375
    %702 = vmatprep.subr.bf16.mxu0 %v380
    %703 = vmatpush1.bf16.msra.mxu0 %v379
    %704 = vmatprep.subr.bf16.mxu0 %v384
    %705 = vmatpush1.bf16.msra.mxu0 %v383
    %706 = vmatprep.subr.bf16.mxu0 %v388
    %707 = vmatpush1.bf16.msra.mxu0 %v387
    %708 = vmatprep.subr.bf16.mxu0 %v392
    %709 = vmatpush1.bf16.msra.mxu0 %v391
    %710 = vmatprep.subr.bf16.mxu0 %v396
    %711 = vmatpush1.bf16.msra.mxu0 %v395
    %712 = vmatprep.subr.bf16.mxu0 %v400
    %713 = vmatpush1.bf16.msra.mxu0 %v399
    %714 = vmatprep.subr.bf16.mxu0 %v404
    %715 = vmatpush1.bf16.msra.mxu0 %v403
    %716 = vmatprep.mubr.bf16.mxu0 %v312
    %717 = vmatmul.mubr.bf16.gmra.mrb[0].mxu0 %v311
    %v718 = vpop.f32.mrb[0].mxu0
    %v719 = vadd.f32 %v546, %v718
    %v720 = vpop.f32.mrb[0].mxu0
    %v721 = vadd.f32 %v550, %v720
    %v722 = vpop.f32.mrb[0].mxu0
    %v723 = vadd.f32 %v546, %v722
    %v724 = vpop.f32.mrb[0].mxu0
    %v725 = vadd.f32 %v550, %v724
    %726 = vdwg.mxu0
    %727 = vmatprep.subr.bf16.mxu0 %v408
    %728 = vmatpush1.bf16.msra.mxu0 %v407
    %729 = vmatprep.subr.bf16.mxu0 %v412
    %730 = vmatpush1.bf16.msra.mxu0 %v411
    %731 = vmatprep.subr.bf16.mxu0 %v416
    %732 = vmatpush1.bf16.msra.mxu0 %v415
    %733 = vmatprep.subr.bf16.mxu0 %v420
    %734 = vmatpush1.bf16.msra.mxu0 %v419
    %735 = vmatprep.subr.bf16.mxu0 %v424
    %736 = vmatpush1.bf16.msra.mxu0 %v423
    %737 = vmatprep.subr.bf16.mxu0 %v428
    %738 = vmatpush1.bf16.msra.mxu0 %v427
    %739 = vmatprep.subr.bf16.mxu0 %v432
    %740 = vmatpush1.bf16.msra.mxu0 %v431
    %741 = vmatprep.subr.bf16.mxu0 %v436
    %742 = vmatpush1.bf16.msra.mxu0 %v435
    %743 = vmatprep.subr.bf16.mxu0 %v440
    %744 = vmatpush1.bf16.msra.mxu0 %v439
    %745 = vmatprep.subr.bf16.mxu0 %v444
    %746 = vmatpush1.bf16.msra.mxu0 %v443
    %747 = vmatprep.subr.bf16.mxu0 %v448
    %748 = vmatpush1.bf16.msra.mxu0 %v447
    %749 = vmatprep.subr.bf16.mxu0 %v452
    %750 = vmatpush1.bf16.msra.mxu0 %v451
    %751 = vmatprep.subr.bf16.mxu0 %v456
    %752 = vmatpush1.bf16.msra.mxu0 %v455
    %753 = vmatprep.subr.bf16.mxu0 %v460
    %754 = vmatpush1.bf16.msra.mxu0 %v459
    %755 = vmatprep.subr.bf16.mxu0 %v464
    %756 = vmatpush1.bf16.msra.mxu0 %v463
    %757 = vmatprep.subr.bf16.mxu0 %v468
    %758 = vmatpush1.bf16.msra.mxu0 %v467
    %759 = vmatprep.mubr.bf16.mxu0 %v325
    %760 = vmatmul.mubr.bf16.gmra.mrb[0].mxu0 %v324
    %v761 = vpop.f32.mrb[0].mxu0
    %v762 = vadd.f32 %v719, %v761
    %v763 = vpop.f32.mrb[0].mxu0
    %v764 = vadd.f32 %v721, %v763
    %v765 = vpop.f32.mrb[0].mxu0
    %v766 = vadd.f32 %v723, %v765
    %v767 = vpop.f32.mrb[0].mxu0
    %v768 = vadd.f32 %v725, %v767
    %769 = vdwg.mxu0
    %770 = vmatprep.subr.bf16.mxu0 %v472
    %771 = vmatpush1.bf16.msra.mxu0 %v471
    %772 = vmatprep.subr.bf16.mxu0 %v476
    %773 = vmatpush1.bf16.msra.mxu0 %v475
    %774 = vmatprep.subr.bf16.mxu0 %v480
    %775 = vmatpush1.bf16.msra.mxu0 %v479
    %776 = vmatprep.subr.bf16.mxu0 %v484
    %777 = vmatpush1.bf16.msra.mxu0 %v483
    %778 = vmatprep.subr.bf16.mxu0 %v488
    %779 = vmatpush1.bf16.msra.mxu0 %v487
    %780 = vmatprep.subr.bf16.mxu0 %v492
    %781 = vmatpush1.bf16.msra.mxu0 %v491
    %782 = vmatprep.subr.bf16.mxu0 %v496
    %783 = vmatpush1.bf16.msra.mxu0 %v495
    %784 = vmatprep.subr.bf16.mxu0 %v500
    %785 = vmatpush1.bf16.msra.mxu0 %v499
    %786 = vmatprep.subr.bf16.mxu0 %v504
    %787 = vmatpush1.bf16.msra.mxu0 %v503
    %788 = vmatprep.subr.bf16.mxu0 %v508
    %789 = vmatpush1.bf16.msra.mxu0 %v507
    %790 = vmatprep.subr.bf16.mxu0 %v512
    %791 = vmatpush1.bf16.msra.mxu0 %v511
    %792 = vmatprep.subr.bf16.mxu0 %v516
    %793 = vmatpush1.bf16.msra.mxu0 %v515
    %794 = vmatprep.subr.bf16.mxu0 %v520
    %795 = vmatpush1.bf16.msra.mxu0 %v519
    %796 = vmatprep.subr.bf16.mxu0 %v524
    %797 = vmatpush1.bf16.msra.mxu0 %v523
    %798 = vmatprep.subr.bf16.mxu0 %v528
    %799 = vmatpush1.bf16.msra.mxu0 %v527
    %800 = vmatprep.subr.bf16.mxu0 %v532
    %801 = vmatpush1.bf16.msra.mxu0 %v531
    %802 = vmatprep.mubr.bf16.mxu0 %v336
    %803 = vmatmul.mubr.bf16.gmra.mrb[0].mxu0 %v335
    %v804 = vpop.f32.mrb[0].mxu0
    %v805 = vadd.f32 %v762, %v804
    %v806 = vpop.f32.mrb[0].mxu0
    %v807 = vadd.f32 %v764, %v806
    %v808 = vpop.f32.mrb[0].mxu0
    %v809 = vadd.f32 %v766, %v808
    %v810 = vpop.f32.mrb[0].mxu0
    %v811 = vadd.f32 %v768, %v810
    %812 = vdwg.mxu0
    %v813 = vld [vmem:[%s8] sm:$0xf]
    %v815 = vlaneseq
    %v816 = vshrl.u32 %v815, 7
    %v817 = vsub.s32 0, %v816
    %v818 = vrot.slane %v813, %v817
    %v819 = vlaneseq
    %v820 = vshrl.u32 %v819, 7
    %v821 = vsub.s32 1, %v820
    %v822 = vrot.slane %v813, %v821
    %v823 = vlaneseq
    %v824 = vshrl.u32 %v823, 7
    %v825 = vsub.s32 2, %v824
    %v826 = vrot.slane %v813, %v825
    %v827 = vlaneseq
    %v828 = vshrl.u32 %v827, 7
    %v829 = vsub.s32 3, %v828
    %v830 = vrot.slane %v813, %v829
    %v835 = vmul.f32 %v676, %v818
    %v836 = vmul.f32 %v678, %v822
    %v837 = vmul.f32 %v805, %v826
    %v838 = vmul.f32 %v807, %v830
    %v839 = vmul.f32 %v680, %v818
    %v840 = vmul.f32 %v682, %v822
    %v841 = vmul.f32 %v809, %v826
    %v842 = vmul.f32 %v811, %v830
    %v843 = vld [vmem:[%s9] sm:$0xf]
    %v845 = vlaneseq
    %v846 = vshrl.u32 %v845, 7
    %v847 = vsub.s32 0, %v846
    %v848 = vrot.slane %v843, %v847
    %v849 = vlaneseq
    %v850 = vshrl.u32 %v849, 7
    %v851 = vsub.s32 1, %v850
    %v852 = vrot.slane %v843, %v851
    %v853 = vlaneseq
    %v854 = vshrl.u32 %v853, 7
    %v855 = vsub.s32 2, %v854
    %v856 = vrot.slane %v843, %v855
    %v857 = vlaneseq
    %v858 = vshrl.u32 %v857, 7
    %v859 = vsub.s32 3, %v858
    %v860 = vrot.slane %v843, %v859
    %v865 = vadd.f32 %v835, %v848
    %v866 = vadd.f32 %v836, %v852
    %v867 = vadd.f32 %v837, %v856
    %v868 = vadd.f32 %v838, %v860
    %v869 = vadd.f32 %v839, %v848
    %v870 = vadd.f32 %v840, %v852
    %v871 = vadd.f32 %v841, %v856
    %v872 = vadd.f32 %v842, %v860
    %v873 = vmax.f32 %v865, 0.0
    %v874 = vmax.f32 %v866, 0.0
    %v875 = vmax.f32 %v867, 0.0
    %v876 = vmax.f32 %v868, 0.0
    %v877 = vmax.f32 %v869, 0.0
    %v878 = vmax.f32 %v870, 0.0
    %v879 = vmax.f32 %v871, 0.0
    %v880 = vmax.f32 %v872, 0.0
    %v881 = vpack.c.bf16 %v877, %v873
    %v882 = vpack.c.bf16 %v878, %v874
    %v883 = vpack.c.bf16 %v879, %v875
    %v884 = vpack.c.bf16 %v880, %v876
    %v885 = vrot.slane %v873, 2
    %v886 = vrot.slane %v874, 2
    %v887 = vrot.slane %v875, 2
    %v888 = vrot.slane %v876, 2
    %v889 = vrot.slane %v877, 2
    %v890 = vrot.slane %v878, 2
    %v891 = vrot.slane %v879, 2
    %v892 = vrot.slane %v880, 2
    %v893 = vsel %vm319, %v885, %v889
    %v894 = vsel %vm319, %v886, %v890
    %v895 = vsel %vm319, %v887, %v891
    %v896 = vsel %vm319, %v888, %v892
    %v897 = vsel %vm319, %v889, %v885
    %v898 = vsel %vm319, %v890, %v886
    %v899 = vsel %vm319, %v891, %v887
    %v900 = vsel %vm319, %v892, %v888
    %v901 = vpack.c.bf16 %v897, %v893
    %v902 = vpack.c.bf16 %v898, %v894
    %v903 = vpack.c.bf16 %v899, %v895
    %v904 = vpack.c.bf16 %v900, %v896
    %v905 = vrot.slane %v873, 6
    %v906 = vrot.slane %v874, 6
    %v907 = vrot.slane %v875, 6
    %v908 = vrot.slane %v876, 6
    %v909 = vrot.slane %v877, 6
    %v910 = vrot.slane %v878, 6
    %v911 = vrot.slane %v879, 6
    %v912 = vrot.slane %v880, 6
    %v913 = vsel %vm330, %v905, %v909
    %v914 = vsel %vm330, %v906, %v910
    %v915 = vsel %vm330, %v907, %v911
    %v916 = vsel %vm330, %v908, %v912
    %v917 = vsel %vm330, %v909, %v905
    %v918 = vsel %vm330, %v910, %v906
    %v919 = vsel %vm330, %v911, %v907
    %v920 = vsel %vm330, %v912, %v908
    %v921 = vpack.c.bf16 %v917, %v913
    %v922 = vpack.c.bf16 %v918, %v914
    %v923 = vpack.c.bf16 %v919, %v915
    %v924 = vpack.c.bf16 %v920, %v916
    %s925 = smul.u32 4, 192
    %s926 = smul.u32 %s925, 2
    %s927 = sshll.u32 %s926, 4
    %928 = dma.done %s102, %s927
    %v929 = vld [vmem:[#allocation3] sm:$0xff]
    %v930 = vld [vmem:[#allocation3 + $0x8] sm:$0xff]
    %v931 = vld [vmem:[#allocation3 + $0x10] sm:$0xff]
    %v932 = vld [vmem:[#allocation3 + $0x18] sm:$0xff]
    %v933 = vld [vmem:[#allocation3 + $0x20] sm:$0xff]
    %v934 = vld [vmem:[#allocation3 + $0x28] sm:$0xff]
    %v935 = vld [vmem:[#allocation3 + $0x30] sm:$0xff]
    %v936 = vld [vmem:[#allocation3 + $0x38] sm:$0xff]
    %v937 = vld [vmem:[#allocation3 + $0x40] sm:$0xff]
    %v938 = vld [vmem:[#allocation3 + $0x48] sm:$0xff]
    %v939 = vld [vmem:[#allocation3 + $0x50] sm:$0xff]
    %v940 = vld [vmem:[#allocation3 + $0x58] sm:$0xff]
    %v941 = vld [vmem:[#allocation3 + $0x60] sm:$0xff]
    %v942 = vld [vmem:[#allocation3 + $0x68] sm:$0xff]
    %v943 = vld [vmem:[#allocation3 + $0x70] sm:$0xff]
    %v944 = vld [vmem:[#allocation3 + $0x78] sm:$0xff]
    %v945 = vld [vmem:[#allocation3 + $0x80] sm:$0xff]
    %v946 = vld [vmem:[#allocation3 + $0x88] sm:$0xff]
    %v947 = vld [vmem:[#allocation3 + $0x90] sm:$0xff]
    %v948 = vld [vmem:[#allocation3 + $0x98] sm:$0xff]
    %v949 = vld [vmem:[#allocation3 + $0xa0] sm:$0xff]
    %v950 = vld [vmem:[#allocation3 + $0xa8] sm:$0xff]
    %v951 = vld [vmem:[#allocation3 + $0xb0] sm:$0xff]
    %v952 = vld [vmem:[#allocation3 + $0xb8] sm:$0xff]
    %v953 = vld [vmem:[#allocation3 + $0xc0] sm:$0xff]
    %v954 = vld [vmem:[#allocation3 + $0xc8] sm:$0xff]
    %v955 = vld [vmem:[#allocation3 + $0xd0] sm:$0xff]
    %v956 = vld [vmem:[#allocation3 + $0xd8] sm:$0xff]
    %v957 = vld [vmem:[#allocation3 + $0xe0] sm:$0xff]
    %v958 = vld [vmem:[#allocation3 + $0xe8] sm:$0xff]
    %v959 = vld [vmem:[#allocation3 + $0xf0] sm:$0xff]
    %v960 = vld [vmem:[#allocation3 + $0xf8] sm:$0xff]
    %v961 = vld [vmem:[#allocation3 + $0x100] sm:$0xff]
    %v962 = vld [vmem:[#allocation3 + $0x108] sm:$0xff]
    %v963 = vld [vmem:[#allocation3 + $0x110] sm:$0xff]
    %v964 = vld [vmem:[#allocation3 + $0x118] sm:$0xff]
    %v965 = vld [vmem:[#allocation3 + $0x120] sm:$0xff]
    %v966 = vld [vmem:[#allocation3 + $0x128] sm:$0xff]
    %v967 = vld [vmem:[#allocation3 + $0x130] sm:$0xff]
    %v968 = vld [vmem:[#allocation3 + $0x138] sm:$0xff]
    %v969 = vld [vmem:[#allocation3 + $0x140] sm:$0xff]
    %v970 = vld [vmem:[#allocation3 + $0x148] sm:$0xff]
    %v971 = vld [vmem:[#allocation3 + $0x150] sm:$0xff]
    %v972 = vld [vmem:[#allocation3 + $0x158] sm:$0xff]
    %v973 = vld [vmem:[#allocation3 + $0x160] sm:$0xff]
    %v974 = vld [vmem:[#allocation3 + $0x168] sm:$0xff]
    %v975 = vld [vmem:[#allocation3 + $0x170] sm:$0xff]
    %v976 = vld [vmem:[#allocation3 + $0x178] sm:$0xff]
    %v977 = vld [vmem:[#allocation3 + $0x180] sm:$0xff]
    %v978 = vld [vmem:[#allocation3 + $0x188] sm:$0xff]
    %v979 = vld [vmem:[#allocation3 + $0x190] sm:$0xff]
    %v980 = vld [vmem:[#allocation3 + $0x198] sm:$0xff]
    %v981 = vld [vmem:[#allocation3 + $0x1a0] sm:$0xff]
    %v982 = vld [vmem:[#allocation3 + $0x1a8] sm:$0xff]
    %v983 = vld [vmem:[#allocation3 + $0x1b0] sm:$0xff]
    %v984 = vld [vmem:[#allocation3 + $0x1b8] sm:$0xff]
    %v985 = vld [vmem:[#allocation3 + $0x1c0] sm:$0xff]
    %v986 = vld [vmem:[#allocation3 + $0x1c8] sm:$0xff]
    %v987 = vld [vmem:[#allocation3 + $0x1d0] sm:$0xff]
    %v988 = vld [vmem:[#allocation3 + $0x1d8] sm:$0xff]
    %v989 = vld [vmem:[#allocation3 + $0x1e0] sm:$0xff]
    %v990 = vld [vmem:[#allocation3 + $0x1e8] sm:$0xff]
    %v991 = vld [vmem:[#allocation3 + $0x1f0] sm:$0xff]
    %v992 = vld [vmem:[#allocation3 + $0x1f8] sm:$0xff]
    %v993 = vld [vmem:[#allocation3 + $0x200] sm:$0xff]
    %v994 = vld [vmem:[#allocation3 + $0x208] sm:$0xff]
    %v995 = vld [vmem:[#allocation3 + $0x210] sm:$0xff]
    %v996 = vld [vmem:[#allocation3 + $0x218] sm:$0xff]
    %v997 = vld [vmem:[#allocation3 + $0x220] sm:$0xff]
    %v998 = vld [vmem:[#allocation3 + $0x228] sm:$0xff]
    %v999 = vld [vmem:[#allocation3 + $0x230] sm:$0xff]
    %v1000 = vld [vmem:[#allocation3 + $0x238] sm:$0xff]
    %v1001 = vld [vmem:[#allocation3 + $0x240] sm:$0xff]
    %v1002 = vld [vmem:[#allocation3 + $0x248] sm:$0xff]
    %v1003 = vld [vmem:[#allocation3 + $0x250] sm:$0xff]
    %v1004 = vld [vmem:[#allocation3 + $0x258] sm:$0xff]
    %v1005 = vld [vmem:[#allocation3 + $0x260] sm:$0xff]
    %v1006 = vld [vmem:[#allocation3 + $0x268] sm:$0xff]
    %v1007 = vld [vmem:[#allocation3 + $0x270] sm:$0xff]
    %v1008 = vld [vmem:[#allocation3 + $0x278] sm:$0xff]
    %v1009 = vld [vmem:[#allocation3 + $0x280] sm:$0xff]
    %v1010 = vld [vmem:[#allocation3 + $0x288] sm:$0xff]
    %v1011 = vld [vmem:[#allocation3 + $0x290] sm:$0xff]
    %v1012 = vld [vmem:[#allocation3 + $0x298] sm:$0xff]
    %v1013 = vld [vmem:[#allocation3 + $0x2a0] sm:$0xff]
    %v1014 = vld [vmem:[#allocation3 + $0x2a8] sm:$0xff]
    %v1015 = vld [vmem:[#allocation3 + $0x2b0] sm:$0xff]
    %v1016 = vld [vmem:[#allocation3 + $0x2b8] sm:$0xff]
    %v1017 = vld [vmem:[#allocation3 + $0x2c0] sm:$0xff]
    %v1018 = vld [vmem:[#allocation3 + $0x2c8] sm:$0xff]
    %v1019 = vld [vmem:[#allocation3 + $0x2d0] sm:$0xff]
    %v1020 = vld [vmem:[#allocation3 + $0x2d8] sm:$0xff]
    %v1021 = vld [vmem:[#allocation3 + $0x2e0] sm:$0xff]
    %v1022 = vld [vmem:[#allocation3 + $0x2e8] sm:$0xff]
    %v1023 = vld [vmem:[#allocation3 + $0x2f0] sm:$0xff]
    %v1024 = vld [vmem:[#allocation3 + $0x2f8] sm:$0xff]
    %v1025 = vld [vmem:[#allocation3 + $0x300] sm:$0xff]
    %v1026 = vld [vmem:[#allocation3 + $0x308] sm:$0xff]
    %v1027 = vld [vmem:[#allocation3 + $0x310] sm:$0xff]
    %v1028 = vld [vmem:[#allocation3 + $0x318] sm:$0xff]
    %v1029 = vld [vmem:[#allocation3 + $0x320] sm:$0xff]
    %v1030 = vld [vmem:[#allocation3 + $0x328] sm:$0xff]
    %v1031 = vld [vmem:[#allocation3 + $0x330] sm:$0xff]
    %v1032 = vld [vmem:[#allocation3 + $0x338] sm:$0xff]
    %v1033 = vld [vmem:[#allocation3 + $0x340] sm:$0xff]
    %v1034 = vld [vmem:[#allocation3 + $0x348] sm:$0xff]
    %v1035 = vld [vmem:[#allocation3 + $0x350] sm:$0xff]
    %v1036 = vld [vmem:[#allocation3 + $0x358] sm:$0xff]
    %v1037 = vld [vmem:[#allocation3 + $0x360] sm:$0xff]
    %v1038 = vld [vmem:[#allocation3 + $0x368] sm:$0xff]
    %v1039 = vld [vmem:[#allocation3 + $0x370] sm:$0xff]
    %v1040 = vld [vmem:[#allocation3 + $0x378] sm:$0xff]
    %v1041 = vld [vmem:[#allocation3 + $0x380] sm:$0xff]
    %v1042 = vld [vmem:[#allocation3 + $0x388] sm:$0xff]
    %v1043 = vld [vmem:[#allocation3 + $0x390] sm:$0xff]
    %v1044 = vld [vmem:[#allocation3 + $0x398] sm:$0xff]
    %v1045 = vld [vmem:[#allocation3 + $0x3a0] sm:$0xff]
    %v1046 = vld [vmem:[#allocation3 + $0x3a8] sm:$0xff]
    %v1047 = vld [vmem:[#allocation3 + $0x3b0] sm:$0xff]
    %v1048 = vld [vmem:[#allocation3 + $0x3b8] sm:$0xff]
    %v1049 = vld [vmem:[#allocation3 + $0x3c0] sm:$0xff]
    %v1050 = vld [vmem:[#allocation3 + $0x3c8] sm:$0xff]
    %v1051 = vld [vmem:[#allocation3 + $0x3d0] sm:$0xff]
    %v1052 = vld [vmem:[#allocation3 + $0x3d8] sm:$0xff]
    %v1053 = vld [vmem:[#allocation3 + $0x3e0] sm:$0xff]
    %v1054 = vld [vmem:[#allocation3 + $0x3e8] sm:$0xff]
    %v1055 = vld [vmem:[#allocation3 + $0x3f0] sm:$0xff]
    %v1056 = vld [vmem:[#allocation3 + $0x3f8] sm:$0xff]
    %v1057 = vld [vmem:[#allocation3 + $0x400] sm:$0xff]
    %v1058 = vld [vmem:[#allocation3 + $0x408] sm:$0xff]
    %v1059 = vld [vmem:[#allocation3 + $0x410] sm:$0xff]
    %v1060 = vld [vmem:[#allocation3 + $0x418] sm:$0xff]
    %v1061 = vld [vmem:[#allocation3 + $0x420] sm:$0xff]
    %v1062 = vld [vmem:[#allocation3 + $0x428] sm:$0xff]
    %v1063 = vld [vmem:[#allocation3 + $0x430] sm:$0xff]
    %v1064 = vld [vmem:[#allocation3 + $0x438] sm:$0xff]
    %v1065 = vld [vmem:[#allocation3 + $0x440] sm:$0xff]
    %v1066 = vld [vmem:[#allocation3 + $0x448] sm:$0xff]
    %v1067 = vld [vmem:[#allocation3 + $0x450] sm:$0xff]
    %v1068 = vld [vmem:[#allocation3 + $0x458] sm:$0xff]
    %v1069 = vld [vmem:[#allocation3 + $0x460] sm:$0xff]
    %v1070 = vld [vmem:[#allocation3 + $0x468] sm:$0xff]
    %v1071 = vld [vmem:[#allocation3 + $0x470] sm:$0xff]
    %v1072 = vld [vmem:[#allocation3 + $0x478] sm:$0xff]
    %v1073 = vld [vmem:[#allocation3 + $0x480] sm:$0xff]
    %v1074 = vld [vmem:[#allocation3 + $0x488] sm:$0xff]
    %v1075 = vld [vmem:[#allocation3 + $0x490] sm:$0xff]
    %v1076 = vld [vmem:[#allocation3 + $0x498] sm:$0xff]
    %v1077 = vld [vmem:[#allocation3 + $0x4a0] sm:$0xff]
    %v1078 = vld [vmem:[#allocation3 + $0x4a8] sm:$0xff]
    %v1079 = vld [vmem:[#allocation3 + $0x4b0] sm:$0xff]
    %v1080 = vld [vmem:[#allocation3 + $0x4b8] sm:$0xff]
    %v1081 = vld [vmem:[#allocation3 + $0x4c0] sm:$0xff]
    %v1082 = vld [vmem:[#allocation3 + $0x4c8] sm:$0xff]
    %v1083 = vld [vmem:[#allocation3 + $0x4d0] sm:$0xff]
    %v1084 = vld [vmem:[#allocation3 + $0x4d8] sm:$0xff]
    %v1085 = vld [vmem:[#allocation3 + $0x4e0] sm:$0xff]
    %v1086 = vld [vmem:[#allocation3 + $0x4e8] sm:$0xff]
    %v1087 = vld [vmem:[#allocation3 + $0x4f0] sm:$0xff]
    %v1088 = vld [vmem:[#allocation3 + $0x4f8] sm:$0xff]
    %v1089 = vld [vmem:[#allocation3 + $0x500] sm:$0xff]
    %v1090 = vld [vmem:[#allocation3 + $0x508] sm:$0xff]
    %v1091 = vld [vmem:[#allocation3 + $0x510] sm:$0xff]
    %v1092 = vld [vmem:[#allocation3 + $0x518] sm:$0xff]
    %v1093 = vld [vmem:[#allocation3 + $0x520] sm:$0xff]
    %v1094 = vld [vmem:[#allocation3 + $0x528] sm:$0xff]
    %v1095 = vld [vmem:[#allocation3 + $0x530] sm:$0xff]
    %v1096 = vld [vmem:[#allocation3 + $0x538] sm:$0xff]
    %v1097 = vld [vmem:[#allocation3 + $0x540] sm:$0xff]
    %v1098 = vld [vmem:[#allocation3 + $0x548] sm:$0xff]
    %v1099 = vld [vmem:[#allocation3 + $0x550] sm:$0xff]
    %v1100 = vld [vmem:[#allocation3 + $0x558] sm:$0xff]
    %v1101 = vld [vmem:[#allocation3 + $0x560] sm:$0xff]
    %v1102 = vld [vmem:[#allocation3 + $0x568] sm:$0xff]
    %v1103 = vld [vmem:[#allocation3 + $0x570] sm:$0xff]
    %v1104 = vld [vmem:[#allocation3 + $0x578] sm:$0xff]
    %v1105 = vld [vmem:[#allocation3 + $0x580] sm:$0xff]
    %v1106 = vld [vmem:[#allocation3 + $0x588] sm:$0xff]
    %v1107 = vld [vmem:[#allocation3 + $0x590] sm:$0xff]
    %v1108 = vld [vmem:[#allocation3 + $0x598] sm:$0xff]
    %v1109 = vld [vmem:[#allocation3 + $0x5a0] sm:$0xff]
    %v1110 = vld [vmem:[#allocation3 + $0x5a8] sm:$0xff]
    %v1111 = vld [vmem:[#allocation3 + $0x5b0] sm:$0xff]
    %v1112 = vld [vmem:[#allocation3 + $0x5b8] sm:$0xff]
    %v1113 = vld [vmem:[#allocation3 + $0x5c0] sm:$0xff]
    %v1114 = vld [vmem:[#allocation3 + $0x5c8] sm:$0xff]
    %v1115 = vld [vmem:[#allocation3 + $0x5d0] sm:$0xff]
    %v1116 = vld [vmem:[#allocation3 + $0x5d8] sm:$0xff]
    %v1117 = vld [vmem:[#allocation3 + $0x5e0] sm:$0xff]
    %v1118 = vld [vmem:[#allocation3 + $0x5e8] sm:$0xff]
    %v1119 = vld [vmem:[#allocation3 + $0x5f0] sm:$0xff]
    %v1120 = vld [vmem:[#allocation3 + $0x5f8] sm:$0xff]
    %v1121 = vld [vmem:[%s11] sm:$0x3]
    %v1123 = vlaneseq
    %v1124 = vshrl.u32 %v1123, 7
    %v1125 = vsub.s32 0, %v1124
    %v1126 = vrot.slane %v1121, %v1125
    %v1127 = vlaneseq
    %v1128 = vshrl.u32 %v1127, 7
    %v1129 = vsub.s32 1, %v1128
    %v1130 = vrot.slane %v1121, %v1129
    %1133 = vmatprep.subr.bf16.mxu0 %v930
    %1134 = vmatpush1.bf16.msra.mxu0 %v929
    %1135 = vmatprep.subr.bf16.mxu0 %v932
    %1136 = vmatpush1.bf16.msra.mxu0 %v931
    %1137 = vmatprep.subr.bf16.mxu0 %v934
    %1138 = vmatpush1.bf16.msra.mxu0 %v933
    %1139 = vmatprep.subr.bf16.mxu0 %v936
    %1140 = vmatpush1.bf16.msra.mxu0 %v935
    %1141 = vmatprep.subr.bf16.mxu0 %v938
    %1142 = vmatpush1.bf16.msra.mxu0 %v937
    %1143 = vmatprep.subr.bf16.mxu0 %v940
    %1144 = vmatpush1.bf16.msra.mxu0 %v939
    %1145 = vmatprep.subr.bf16.mxu0 %v942
    %1146 = vmatpush1.bf16.msra.mxu0 %v941
    %1147 = vmatprep.subr.bf16.mxu0 %v944
    %1148 = vmatpush1.bf16.msra.mxu0 %v943
    %1149 = vmatprep.subr.bf16.mxu0 %v946
    %1150 = vmatpush1.bf16.msra.mxu0 %v945
    %1151 = vmatprep.subr.bf16.mxu0 %v948
    %1152 = vmatpush1.bf16.msra.mxu0 %v947
    %1153 = vmatprep.subr.bf16.mxu0 %v950
    %1154 = vmatpush1.bf16.msra.mxu0 %v949
    %1155 = vmatprep.subr.bf16.mxu0 %v952
    %1156 = vmatpush1.bf16.msra.mxu0 %v951
    %1157 = vmatprep.subr.bf16.mxu0 %v954
    %1158 = vmatpush1.bf16.msra.mxu0 %v953
    %1159 = vmatprep.subr.bf16.mxu0 %v956
    %1160 = vmatpush1.bf16.msra.mxu0 %v955
    %1161 = vmatprep.subr.bf16.mxu0 %v958
    %1162 = vmatpush1.bf16.msra.mxu0 %v957
    %1163 = vmatprep.subr.bf16.mxu0 %v960
    %1164 = vmatpush1.bf16.msra.mxu0 %v959
    %1165 = vmatprep.mubr.bf16.mxu0 %v882
    %1166 = vmatmul.mubr.bf16.gmra.mrb[0].mxu0 %v881
    %v1167 = vpop.f32.mrb[0].mxu0
    %v1168 = vadd.f32 %v1126, %v1167
    %v1169 = vpop.f32.mrb[0].mxu0
    %v1170 = vadd.f32 %v1130, %v1169
    %v1171 = vpop.f32.mrb[0].mxu0
    %v1172 = vadd.f32 %v1126, %v1171
    %v1173 = vpop.f32.mrb[0].mxu0
    %v1174 = vadd.f32 %v1130, %v1173
    %1175 = vdwg.mxu0
    %1176 = vmatprep.subr.bf16.mxu0 %v962
    %1177 = vmatpush1.bf16.msra.mxu0 %v961
    %1178 = vmatprep.subr.bf16.mxu0 %v964
    %1179 = vmatpush1.bf16.msra.mxu0 %v963
    %1180 = vmatprep.subr.bf16.mxu0 %v966
    %1181 = vmatpush1.bf16.msra.mxu0 %v965
    %1182 = vmatprep.subr.bf16.mxu0 %v968
    %1183 = vmatpush1.bf16.msra.mxu0 %v967
    %1184 = vmatprep.subr.bf16.mxu0 %v970
    %1185 = vmatpush1.bf16.msra.mxu0 %v969
    %1186 = vmatprep.subr.bf16.mxu0 %v972
    %1187 = vmatpush1.bf16.msra.mxu0 %v971
    %1188 = vmatprep.subr.bf16.mxu0 %v974
    %1189 = vmatpush1.bf16.msra.mxu0 %v973
    %1190 = vmatprep.subr.bf16.mxu0 %v976
    %1191 = vmatpush1.bf16.msra.mxu0 %v975
    %1192 = vmatprep.subr.bf16.mxu0 %v978
    %1193 = vmatpush1.bf16.msra.mxu0 %v977
    %1194 = vmatprep.subr.bf16.mxu0 %v980
    %1195 = vmatpush1.bf16.msra.mxu0 %v979
    %1196 = vmatprep.subr.bf16.mxu0 %v982
    %1197 = vmatpush1.bf16.msra.mxu0 %v981
    %1198 = vmatprep.subr.bf16.mxu0 %v984
    %1199 = vmatpush1.bf16.msra.mxu0 %v983
    %1200 = vmatprep.subr.bf16.mxu0 %v986
    %1201 = vmatpush1.bf16.msra.mxu0 %v985
    %1202 = vmatprep.subr.bf16.mxu0 %v988
    %1203 = vmatpush1.bf16.msra.mxu0 %v987
    %1204 = vmatprep.subr.bf16.mxu0 %v990
    %1205 = vmatpush1.bf16.msra.mxu0 %v989
    %1206 = vmatprep.subr.bf16.mxu0 %v992
    %1207 = vmatpush1.bf16.msra.mxu0 %v991
    %1208 = vmatprep.mubr.bf16.mxu0 %v884
    %1209 = vmatmul.mubr.bf16.gmra.mrb[0].mxu0 %v883
    %v1210 = vpop.f32.mrb[0].mxu0
    %v1211 = vadd.f32 %v1168, %v1210
    %v1212 = vpop.f32.mrb[0].mxu0
    %v1213 = vadd.f32 %v1170, %v1212
    %v1214 = vpop.f32.mrb[0].mxu0
    %v1215 = vadd.f32 %v1172, %v1214
    %v1216 = vpop.f32.mrb[0].mxu0
    %v1217 = vadd.f32 %v1174, %v1216
    %1218 = vdwg.mxu0
    %1219 = vmatprep.subr.bf16.mxu0 %v994
    %1220 = vmatpush1.bf16.msra.mxu0 %v993
    %1221 = vmatprep.subr.bf16.mxu0 %v996
    %1222 = vmatpush1.bf16.msra.mxu0 %v995
    %1223 = vmatprep.subr.bf16.mxu0 %v998
    %1224 = vmatpush1.bf16.msra.mxu0 %v997
    %1225 = vmatprep.subr.bf16.mxu0 %v1000
    %1226 = vmatpush1.bf16.msra.mxu0 %v999
    %1227 = vmatprep.subr.bf16.mxu0 %v1002
    %1228 = vmatpush1.bf16.msra.mxu0 %v1001
    %1229 = vmatprep.subr.bf16.mxu0 %v1004
    %1230 = vmatpush1.bf16.msra.mxu0 %v1003
    %1231 = vmatprep.subr.bf16.mxu0 %v1006
    %1232 = vmatpush1.bf16.msra.mxu0 %v1005
    %1233 = vmatprep.subr.bf16.mxu0 %v1008
    %1234 = vmatpush1.bf16.msra.mxu0 %v1007
    %1235 = vmatprep.subr.bf16.mxu0 %v1010
    %1236 = vmatpush1.bf16.msra.mxu0 %v1009
    %1237 = vmatprep.subr.bf16.mxu0 %v1012
    %1238 = vmatpush1.bf16.msra.mxu0 %v1011
    %1239 = vmatprep.subr.bf16.mxu0 %v1014
    %1240 = vmatpush1.bf16.msra.mxu0 %v1013
    %1241 = vmatprep.subr.bf16.mxu0 %v1016
    %1242 = vmatpush1.bf16.msra.mxu0 %v1015
    %1243 = vmatprep.subr.bf16.mxu0 %v1018
    %1244 = vmatpush1.bf16.msra.mxu0 %v1017
    %1245 = vmatprep.subr.bf16.mxu0 %v1020
    %1246 = vmatpush1.bf16.msra.mxu0 %v1019
    %1247 = vmatprep.subr.bf16.mxu0 %v1022
    %1248 = vmatpush1.bf16.msra.mxu0 %v1021
    %1249 = vmatprep.subr.bf16.mxu0 %v1024
    %1250 = vmatpush1.bf16.msra.mxu0 %v1023
    %1251 = vmatprep.mubr.bf16.mxu0 %v902
    %1252 = vmatmul.mubr.bf16.gmra.mrb[0].mxu0 %v901
    %v1253 = vpop.f32.mrb[0].mxu0
    %v1254 = vadd.f32 %v1211, %v1253
    %v1255 = vpop.f32.mrb[0].mxu0
    %v1256 = vadd.f32 %v1213, %v1255
    %v1257 = vpop.f32.mrb[0].mxu0
    %v1258 = vadd.f32 %v1215, %v1257
    %v1259 = vpop.f32.mrb[0].mxu0
    %v1260 = vadd.f32 %v1217, %v1259
    %1261 = vdwg.mxu0
    %1262 = vmatprep.subr.bf16.mxu0 %v1026
    %1263 = vmatpush1.bf16.msra.mxu0 %v1025
    %1264 = vmatprep.subr.bf16.mxu0 %v1028
    %1265 = vmatpush1.bf16.msra.mxu0 %v1027
    %1266 = vmatprep.subr.bf16.mxu0 %v1030
    %1267 = vmatpush1.bf16.msra.mxu0 %v1029
    %1268 = vmatprep.subr.bf16.mxu0 %v1032
    %1269 = vmatpush1.bf16.msra.mxu0 %v1031
    %1270 = vmatprep.subr.bf16.mxu0 %v1034
    %1271 = vmatpush1.bf16.msra.mxu0 %v1033
    %1272 = vmatprep.subr.bf16.mxu0 %v1036
    %1273 = vmatpush1.bf16.msra.mxu0 %v1035
    %1274 = vmatprep.subr.bf16.mxu0 %v1038
    %1275 = vmatpush1.bf16.msra.mxu0 %v1037
    %1276 = vmatprep.subr.bf16.mxu0 %v1040
    %1277 = vmatpush1.bf16.msra.mxu0 %v1039
    %1278 = vmatprep.subr.bf16.mxu0 %v1042
    %1279 = vmatpush1.bf16.msra.mxu0 %v1041
    %1280 = vmatprep.subr.bf16.mxu0 %v1044
    %1281 = vmatpush1.bf16.msra.mxu0 %v1043
    %1282 = vmatprep.subr.bf16.mxu0 %v1046
    %1283 = vmatpush1.bf16.msra.mxu0 %v1045
    %1284 = vmatprep.subr.bf16.mxu0 %v1048
    %1285 = vmatpush1.bf16.msra.mxu0 %v1047
    %1286 = vmatprep.subr.bf16.mxu0 %v1050
    %1287 = vmatpush1.bf16.msra.mxu0 %v1049
    %1288 = vmatprep.subr.bf16.mxu0 %v1052
    %1289 = vmatpush1.bf16.msra.mxu0 %v1051
    %1290 = vmatprep.subr.bf16.mxu0 %v1054
    %1291 = vmatpush1.bf16.msra.mxu0 %v1053
    %1292 = vmatprep.subr.bf16.mxu0 %v1056
    %1293 = vmatpush1.bf16.msra.mxu0 %v1055
    %1294 = vmatprep.mubr.bf16.mxu0 %v904
    %1295 = vmatmul.mubr.bf16.gmra.mrb[0].mxu0 %v903
    %v1296 = vpop.f32.mrb[0].mxu0
    %v1297 = vadd.f32 %v1254, %v1296
    %v1298 = vpop.f32.mrb[0].mxu0
    %v1299 = vadd.f32 %v1256, %v1298
    %v1300 = vpop.f32.mrb[0].mxu0
    %v1301 = vadd.f32 %v1258, %v1300
    %v1302 = vpop.f32.mrb[0].mxu0
    %v1303 = vadd.f32 %v1260, %v1302
    %1304 = vdwg.mxu0
    %1305 = vmatprep.subr.bf16.mxu0 %v1058
    %1306 = vmatpush1.bf16.msra.mxu0 %v1057
    %1307 = vmatprep.subr.bf16.mxu0 %v1060
    %1308 = vmatpush1.bf16.msra.mxu0 %v1059
    %1309 = vmatprep.subr.bf16.mxu0 %v1062
    %1310 = vmatpush1.bf16.msra.mxu0 %v1061
    %1311 = vmatprep.subr.bf16.mxu0 %v1064
    %1312 = vmatpush1.bf16.msra.mxu0 %v1063
    %1313 = vmatprep.subr.bf16.mxu0 %v1066
    %1314 = vmatpush1.bf16.msra.mxu0 %v1065
    %1315 = vmatprep.subr.bf16.mxu0 %v1068
    %1316 = vmatpush1.bf16.msra.mxu0 %v1067
    %1317 = vmatprep.subr.bf16.mxu0 %v1070
    %1318 = vmatpush1.bf16.msra.mxu0 %v1069
    %1319 = vmatprep.subr.bf16.mxu0 %v1072
    %1320 = vmatpush1.bf16.msra.mxu0 %v1071
    %1321 = vmatprep.subr.bf16.mxu0 %v1074
    %1322 = vmatpush1.bf16.msra.mxu0 %v1073
    %1323 = vmatprep.subr.bf16.mxu0 %v1076
    %1324 = vmatpush1.bf16.msra.mxu0 %v1075
    %1325 = vmatprep.subr.bf16.mxu0 %v1078
    %1326 = vmatpush1.bf16.msra.mxu0 %v1077
    %1327 = vmatprep.subr.bf16.mxu0 %v1080
    %1328 = vmatpush1.bf16.msra.mxu0 %v1079
    %1329 = vmatprep.subr.bf16.mxu0 %v1082
    %1330 = vmatpush1.bf16.msra.mxu0 %v1081
    %1331 = vmatprep.subr.bf16.mxu0 %v1084
    %1332 = vmatpush1.bf16.msra.mxu0 %v1083
    %1333 = vmatprep.subr.bf16.mxu0 %v1086
    %1334 = vmatpush1.bf16.msra.mxu0 %v1085
    %1335 = vmatprep.subr.bf16.mxu0 %v1088
    %1336 = vmatpush1.bf16.msra.mxu0 %v1087
    %1337 = vmatprep.mubr.bf16.mxu0 %v922
    %1338 = vmatmul.mubr.bf16.gmra.mrb[0].mxu0 %v921
    %v1339 = vpop.f32.mrb[0].mxu0
    %v1340 = vadd.f32 %v1297, %v1339
    %v1341 = vpop.f32.mrb[0].mxu0
    %v1342 = vadd.f32 %v1299, %v1341
    %v1343 = vpop.f32.mrb[0].mxu0
    %v1344 = vadd.f32 %v1301, %v1343
    %v1345 = vpop.f32.mrb[0].mxu0
    %v1346 = vadd.f32 %v1303, %v1345
    %1347 = vdwg.mxu0
    %1348 = vmatprep.subr.bf16.mxu0 %v1090
    %1349 = vmatpush1.bf16.msra.mxu0 %v1089
    %1350 = vmatprep.subr.bf16.mxu0 %v1092
    %1351 = vmatpush1.bf16.msra.mxu0 %v1091
    %1352 = vmatprep.subr.bf16.mxu0 %v1094
    %1353 = vmatpush1.bf16.msra.mxu0 %v1093
    %1354 = vmatprep.subr.bf16.mxu0 %v1096
    %1355 = vmatpush1.bf16.msra.mxu0 %v1095
    %1356 = vmatprep.subr.bf16.mxu0 %v1098
    %1357 = vmatpush1.bf16.msra.mxu0 %v1097
    %1358 = vmatprep.subr.bf16.mxu0 %v1100
    %1359 = vmatpush1.bf16.msra.mxu0 %v1099
    %1360 = vmatprep.subr.bf16.mxu0 %v1102
    %1361 = vmatpush1.bf16.msra.mxu0 %v1101
    %1362 = vmatprep.subr.bf16.mxu0 %v1104
    %1363 = vmatpush1.bf16.msra.mxu0 %v1103
    %1364 = vmatprep.subr.bf16.mxu0 %v1106
    %1365 = vmatpush1.bf16.msra.mxu0 %v1105
    %1366 = vmatprep.subr.bf16.mxu0 %v1108
    %1367 = vmatpush1.bf16.msra.mxu0 %v1107
    %1368 = vmatprep.subr.bf16.mxu0 %v1110
    %1369 = vmatpush1.bf16.msra.mxu0 %v1109
    %1370 = vmatprep.subr.bf16.mxu0 %v1112
    %1371 = vmatpush1.bf16.msra.mxu0 %v1111
    %1372 = vmatprep.subr.bf16.mxu0 %v1114
    %1373 = vmatpush1.bf16.msra.mxu0 %v1113
    %1374 = vmatprep.subr.bf16.mxu0 %v1116
    %1375 = vmatpush1.bf16.msra.mxu0 %v1115
    %1376 = vmatprep.subr.bf16.mxu0 %v1118
    %1377 = vmatpush1.bf16.msra.mxu0 %v1117
    %1378 = vmatprep.subr.bf16.mxu0 %v1120
    %1379 = vmatpush1.bf16.msra.mxu0 %v1119
    %1380 = vmatprep.mubr.bf16.mxu0 %v924
    %1381 = vmatmul.mubr.bf16.gmra.mrb[0].mxu0 %v923
    %v1382 = vpop.f32.mrb[0].mxu0
    %v1383 = vadd.f32 %v1340, %v1382
    %v1384 = vpop.f32.mrb[0].mxu0
    %v1385 = vadd.f32 %v1342, %v1384
    %v1386 = vpop.f32.mrb[0].mxu0
    %v1387 = vadd.f32 %v1344, %v1386
    %v1388 = vpop.f32.mrb[0].mxu0
    %v1389 = vadd.f32 %v1346, %v1388
    %1390 = vdwg.mxu0
    %v1391 = vadd.f32 %v1383, %v267
    %v1392 = vadd.f32 %v1385, %v269
    %v1393 = vadd.f32 %v1387, %v271
    %v1394 = vadd.f32 %v1389, %v273
    %v1395 = vld [vmem:[%s12] sm:$0x3]
    %v1397 = vlaneseq
    %v1398 = vshrl.u32 %v1397, 7
    %v1399 = vsub.s32 0, %v1398
    %v1400 = vrot.slane %v1395, %v1399
    %v1401 = vlaneseq
    %v1402 = vshrl.u32 %v1401, 7
    %v1403 = vsub.s32 1, %v1402
    %v1404 = vrot.slane %v1395, %v1403
    %v1407 = vmul.f32 %v1391, %v1400
    %v1408 = vmul.f32 %v1392, %v1404
    %v1409 = vmul.f32 %v1393, %v1400
    %v1410 = vmul.f32 %v1394, %v1404
    %v1411 = vld [vmem:[%s13] sm:$0x3]
    %v1413 = vlaneseq
    %v1414 = vshrl.u32 %v1413, 7
    %v1415 = vsub.s32 0, %v1414
    %v1416 = vrot.slane %v1411, %v1415
    %v1417 = vlaneseq
    %v1418 = vshrl.u32 %v1417, 7
    %v1419 = vsub.s32 1, %v1418
    %v1420 = vrot.slane %v1411, %v1419
    %v1423 = vadd.f32 %v1407, %v1416
    %v1424 = vadd.f32 %v1408, %v1420
    %v1425 = vadd.f32 %v1409, %v1416
    %v1426 = vadd.f32 %v1410, %v1420
    %v1427 = vmax.f32 %v1423, 0.0
    %v1428 = vmax.f32 %v1424, 0.0
    %v1429 = vmax.f32 %v1425, 0.0
    %v1430 = vmax.f32 %v1426, 0.0
    %v1431 = vpack.c.bf16 %v1429, %v1427
    %v1432 = vpack.c.bf16 %v1430, %v1428
    %v1433 = vrot.slane %v1427, 2
    %v1434 = vrot.slane %v1428, 2
    %v1435 = vrot.slane %v1429, 2
    %v1436 = vrot.slane %v1430, 2
    %v1437 = vsel %vm319, %v1433, %v1435
    %v1438 = vsel %vm319, %v1434, %v1436
    %v1439 = vsel %vm319, %v1435, %v1433
    %v1440 = vsel %vm319, %v1436, %v1434
    %v1441 = vpack.c.bf16 %v1439, %v1437
    %v1442 = vpack.c.bf16 %v1440, %v1438
    %v1443 = vrot.slane %v1427, 6
    %v1444 = vrot.slane %v1428, 6
    %v1445 = vrot.slane %v1429, 6
    %v1446 = vrot.slane %v1430, 6
    %v1447 = vsel %vm330, %v1443, %v1445
    %v1448 = vsel %vm330, %v1444, %v1446
    %v1449 = vsel %vm330, %v1445, %v1443
    %v1450 = vsel %vm330, %v1446, %v1444
    %v1451 = vpack.c.bf16 %v1449, %v1447
    %v1452 = vpack.c.bf16 %v1450, %v1448
    %v1453 = vld [vmem:[#allocation5] sm:$0xf]
    %v1454 = vld [vmem:[#allocation5 + $0x4] sm:$0xf]
    %v1455 = vld [vmem:[#allocation5 + $0x8] sm:$0xf]
    %v1456 = vld [vmem:[#allocation5 + $0xc] sm:$0xf]
    %v1457 = vld [vmem:[#allocation5 + $0x10] sm:$0xf]
    %v1458 = vld [vmem:[#allocation5 + $0x14] sm:$0xf]
    %v1459 = vld [vmem:[#allocation5 + $0x18] sm:$0xf]
    %v1460 = vld [vmem:[#allocation5 + $0x1c] sm:$0xf]
    %v1461 = vld [vmem:[#allocation5 + $0x20] sm:$0xf]
    %v1462 = vld [vmem:[#allocation5 + $0x24] sm:$0xf]
    %v1463 = vld [vmem:[#allocation5 + $0x28] sm:$0xf]
    %v1464 = vld [vmem:[#allocation5 + $0x2c] sm:$0xf]
    %v1465 = vld [vmem:[#allocation5 + $0x30] sm:$0xf]
    %v1466 = vld [vmem:[#allocation5 + $0x34] sm:$0xf]
    %v1467 = vld [vmem:[#allocation5 + $0x38] sm:$0xf]
    %v1468 = vld [vmem:[#allocation5 + $0x3c] sm:$0xf]
    %v1469 = vld [vmem:[#allocation5 + $0x40] sm:$0xf]
    %v1470 = vld [vmem:[#allocation5 + $0x44] sm:$0xf]
    %v1471 = vld [vmem:[#allocation5 + $0x48] sm:$0xf]
    %v1472 = vld [vmem:[#allocation5 + $0x4c] sm:$0xf]
    %v1473 = vld [vmem:[#allocation5 + $0x50] sm:$0xf]
    %v1474 = vld [vmem:[#allocation5 + $0x54] sm:$0xf]
    %v1475 = vld [vmem:[#allocation5 + $0x58] sm:$0xf]
    %v1476 = vld [vmem:[#allocation5 + $0x5c] sm:$0xf]
    %v1477 = vld [vmem:[#allocation5 + $0x60] sm:$0xf]
    %v1478 = vld [vmem:[#allocation5 + $0x64] sm:$0xf]
    %v1479 = vld [vmem:[#allocation5 + $0x68] sm:$0xf]
    %v1480 = vld [vmem:[#allocation5 + $0x6c] sm:$0xf]
    %v1481 = vld [vmem:[#allocation5 + $0x70] sm:$0xf]
    %v1482 = vld [vmem:[#allocation5 + $0x74] sm:$0xf]
    %v1483 = vld [vmem:[#allocation5 + $0x78] sm:$0xf]
    %v1484 = vld [vmem:[#allocation5 + $0x7c] sm:$0xf]
    %v1485 = vld [vmem:[#allocation5 + $0x80] sm:$0xf]
    %v1486 = vld [vmem:[#allocation5 + $0x84] sm:$0xf]
    %v1487 = vld [vmem:[#allocation5 + $0x88] sm:$0xf]
    %v1488 = vld [vmem:[#allocation5 + $0x8c] sm:$0xf]
    %v1489 = vld [vmem:[#allocation5 + $0x90] sm:$0xf]
    %v1490 = vld [vmem:[#allocation5 + $0x94] sm:$0xf]
    %v1491 = vld [vmem:[#allocation5 + $0x98] sm:$0xf]
    %v1492 = vld [vmem:[#allocation5 + $0x9c] sm:$0xf]
    %v1493 = vld [vmem:[#allocation5 + $0xa0] sm:$0xf]
    %v1494 = vld [vmem:[#allocation5 + $0xa4] sm:$0xf]
    %v1495 = vld [vmem:[#allocation5 + $0xa8] sm:$0xf]
    %v1496 = vld [vmem:[#allocation5 + $0xac] sm:$0xf]
    %v1497 = vld [vmem:[#allocation5 + $0xb0] sm:$0xf]
    %v1498 = vld [vmem:[#allocation5 + $0xb4] sm:$0xf]
    %v1499 = vld [vmem:[#allocation5 + $0xb8] sm:$0xf]
    %v1500 = vld [vmem:[#allocation5 + $0xbc] sm:$0xf]
    %v1501 = vld [vmem:[#allocation5 + $0xc0] sm:$0xf]
    %v1502 = vld [vmem:[#allocation5 + $0xc4] sm:$0xf]
    %v1503 = vld [vmem:[#allocation5 + $0xc8] sm:$0xf]
    %v1504 = vld [vmem:[#allocation5 + $0xcc] sm:$0xf]
    %v1505 = vld [vmem:[#allocation5 + $0xd0] sm:$0xf]
    %v1506 = vld [vmem:[#allocation5 + $0xd4] sm:$0xf]
    %v1507 = vld [vmem:[#allocation5 + $0xd8] sm:$0xf]
    %v1508 = vld [vmem:[#allocation5 + $0xdc] sm:$0xf]
    %v1509 = vld [vmem:[#allocation5 + $0xe0] sm:$0xf]
    %v1510 = vld [vmem:[#allocation5 + $0xe4] sm:$0xf]
    %v1511 = vld [vmem:[#allocation5 + $0xe8] sm:$0xf]
    %v1512 = vld [vmem:[#allocation5 + $0xec] sm:$0xf]
    %v1513 = vld [vmem:[#allocation5 + $0xf0] sm:$0xf]
    %v1514 = vld [vmem:[#allocation5 + $0xf4] sm:$0xf]
    %v1515 = vld [vmem:[#allocation5 + $0xf8] sm:$0xf]
    %v1516 = vld [vmem:[#allocation5 + $0xfc] sm:$0xf]
    %v1517 = vld [vmem:[#allocation5 + $0x100] sm:$0xf]
    %v1518 = vld [vmem:[#allocation5 + $0x104] sm:$0xf]
    %v1519 = vld [vmem:[#allocation5 + $0x108] sm:$0xf]
    %v1520 = vld [vmem:[#allocation5 + $0x10c] sm:$0xf]
    %v1521 = vld [vmem:[#allocation5 + $0x110] sm:$0xf]
    %v1522 = vld [vmem:[#allocation5 + $0x114] sm:$0xf]
    %v1523 = vld [vmem:[#allocation5 + $0x118] sm:$0xf]
    %v1524 = vld [vmem:[#allocation5 + $0x11c] sm:$0xf]
    %v1525 = vld [vmem:[#allocation5 + $0x120] sm:$0xf]
    %v1526 = vld [vmem:[#allocation5 + $0x124] sm:$0xf]
    %v1527 = vld [vmem:[#allocation5 + $0x128] sm:$0xf]
    %v1528 = vld [vmem:[#allocation5 + $0x12c] sm:$0xf]
    %v1529 = vld [vmem:[#allocation5 + $0x130] sm:$0xf]
    %v1530 = vld [vmem:[#allocation5 + $0x134] sm:$0xf]
    %v1531 = vld [vmem:[#allocation5 + $0x138] sm:$0xf]
    %v1532 = vld [vmem:[#allocation5 + $0x13c] sm:$0xf]
    %v1533 = vld [vmem:[#allocation5 + $0x140] sm:$0xf]
    %v1534 = vld [vmem:[#allocation5 + $0x144] sm:$0xf]
    %v1535 = vld [vmem:[#allocation5 + $0x148] sm:$0xf]
    %v1536 = vld [vmem:[#allocation5 + $0x14c] sm:$0xf]
    %v1537 = vld [vmem:[#allocation5 + $0x150] sm:$0xf]
    %v1538 = vld [vmem:[#allocation5 + $0x154] sm:$0xf]
    %v1539 = vld [vmem:[#allocation5 + $0x158] sm:$0xf]
    %v1540 = vld [vmem:[#allocation5 + $0x15c] sm:$0xf]
    %v1541 = vld [vmem:[#allocation5 + $0x160] sm:$0xf]
    %v1542 = vld [vmem:[#allocation5 + $0x164] sm:$0xf]
    %v1543 = vld [vmem:[#allocation5 + $0x168] sm:$0xf]
    %v1544 = vld [vmem:[#allocation5 + $0x16c] sm:$0xf]
    %v1545 = vld [vmem:[#allocation5 + $0x170] sm:$0xf]
    %v1546 = vld [vmem:[#allocation5 + $0x174] sm:$0xf]
    %v1547 = vld [vmem:[#allocation5 + $0x178] sm:$0xf]
    %v1548 = vld [vmem:[#allocation5 + $0x17c] sm:$0xf]
    %v1549 = vld [vmem:[%s15] sm:$0x1]
    %v1551 = vlaneseq
    %v1552 = vshrl.u32 %v1551, 7
    %v1553 = vsub.s32 0, %v1552
    %v1554 = vrot.slane %v1549, %v1553
    %v1652 = vunpack.c.l.b16 %v1453
    %v1653 = vunpack.c.l.b16 %v1454
    %v1654 = vunpack.c.l.b16 %v1455
    %v1655 = vunpack.c.l.b16 %v1456
    %v1656 = vunpack.c.l.b16 %v1457
    %v1657 = vunpack.c.l.b16 %v1458
    %v1658 = vunpack.c.l.b16 %v1459
    %v1659 = vunpack.c.l.b16 %v1460
    %v1660 = vunpack.c.l.b16 %v1461
    %v1661 = vunpack.c.l.b16 %v1462
    %v1662 = vunpack.c.l.b16 %v1463
    %v1663 = vunpack.c.l.b16 %v1464
    %v1664 = vunpack.c.l.b16 %v1465
    %v1665 = vunpack.c.l.b16 %v1466
    %v1666 = vunpack.c.l.b16 %v1467
    %v1667 = vunpack.c.l.b16 %v1468
    %v1668 = vunpack.c.l.b16 %v1469
    %v1669 = vunpack.c.l.b16 %v1470
    %v1670 = vunpack.c.l.b16 %v1471
    %v1671 = vunpack.c.l.b16 %v1472
    %v1672 = vunpack.c.l.b16 %v1473
    %v1673 = vunpack.c.l.b16 %v1474
    %v1674 = vunpack.c.l.b16 %v1475
    %v1675 = vunpack.c.l.b16 %v1476
    %v1676 = vunpack.c.l.b16 %v1477
    %v1677 = vunpack.c.l.b16 %v1478
    %v1678 = vunpack.c.l.b16 %v1479
    %v1679 = vunpack.c.l.b16 %v1480
    %v1680 = vunpack.c.l.b16 %v1481
    %v1681 = vunpack.c.l.b16 %v1482
    %v1682 = vunpack.c.l.b16 %v1483
    %v1683 = vunpack.c.l.b16 %v1484
    %v1684 = vunpack.c.l.b16 %v1485
    %v1685 = vunpack.c.l.b16 %v1486
    %v1686 = vunpack.c.l.b16 %v1487
    %v1687 = vunpack.c.l.b16 %v1488
    %v1688 = vunpack.c.l.b16 %v1489
    %v1689 = vunpack.c.l.b16 %v1490
    %v1690 = vunpack.c.l.b16 %v1491
    %v1691 = vunpack.c.l.b16 %v1492
    %v1692 = vunpack.c.l.b16 %v1493
    %v1693 = vunpack.c.l.b16 %v1494
    %v1694 = vunpack.c.l.b16 %v1495
    %v1695 = vunpack.c.l.b16 %v1496
    %v1696 = vunpack.c.l.b16 %v1497
    %v1697 = vunpack.c.l.b16 %v1498
    %v1698 = vunpack.c.l.b16 %v1499
    %v1699 = vunpack.c.l.b16 %v1500
    %v1700 = vunpack.c.l.b16 %v1501
    %v1701 = vunpack.c.l.b16 %v1502
    %v1702 = vunpack.c.l.b16 %v1503
    %v1703 = vunpack.c.l.b16 %v1504
    %v1704 = vunpack.c.l.b16 %v1505
    %v1705 = vunpack.c.l.b16 %v1506
    %v1706 = vunpack.c.l.b16 %v1507
    %v1707 = vunpack.c.l.b16 %v1508
    %v1708 = vunpack.c.l.b16 %v1509
    %v1709 = vunpack.c.l.b16 %v1510
    %v1710 = vunpack.c.l.b16 %v1511
    %v1711 = vunpack.c.l.b16 %v1512
    %v1712 = vunpack.c.l.b16 %v1513
    %v1713 = vunpack.c.l.b16 %v1514
    %v1714 = vunpack.c.l.b16 %v1515
    %v1715 = vunpack.c.l.b16 %v1516
    %v1716 = vunpack.c.l.b16 %v1517
    %v1717 = vunpack.c.l.b16 %v1518
    %v1718 = vunpack.c.l.b16 %v1519
    %v1719 = vunpack.c.l.b16 %v1520
    %v1720 = vunpack.c.l.b16 %v1521
    %v1721 = vunpack.c.l.b16 %v1522
    %v1722 = vunpack.c.l.b16 %v1523
    %v1723 = vunpack.c.l.b16 %v1524
    %v1724 = vunpack.c.l.b16 %v1525
    %v1725 = vunpack.c.l.b16 %v1526
    %v1726 = vunpack.c.l.b16 %v1527
    %v1727 = vunpack.c.l.b16 %v1528
    %v1728 = vunpack.c.l.b16 %v1529
    %v1729 = vunpack.c.l.b16 %v1530
    %v1730 = vunpack.c.l.b16 %v1531
    %v1731 = vunpack.c.l.b16 %v1532
    %v1732 = vunpack.c.l.b16 %v1533
    %v1733 = vunpack.c.l.b16 %v1534
    %v1734 = vunpack.c.l.b16 %v1535
    %v1735 = vunpack.c.l.b16 %v1536
    %v1736 = vunpack.c.l.b16 %v1537
    %v1737 = vunpack.c.l.b16 %v1538
    %v1738 = vunpack.c.l.b16 %v1539
    %v1739 = vunpack.c.l.b16 %v1540
    %v1740 = vunpack.c.l.b16 %v1541
    %v1741 = vunpack.c.l.b16 %v1542
    %v1742 = vunpack.c.l.b16 %v1543
    %v1743 = vunpack.c.l.b16 %v1544
    %v1744 = vunpack.c.l.b16 %v1545
    %v1745 = vunpack.c.l.b16 %v1546
    %v1746 = vunpack.c.l.b16 %v1547
    %v1747 = vunpack.c.l.b16 %v1548
    %v1748 = vpack.c.b16 %v1653, %v1652
    %v1749 = vpack.c.b16 %v1655, %v1654
    %v1750 = vpack.c.b16 %v1657, %v1656
    %v1751 = vpack.c.b16 %v1659, %v1658
    %v1752 = vpack.c.b16 %v1661, %v1660
    %v1753 = vpack.c.b16 %v1663, %v1662
    %v1754 = vpack.c.b16 %v1665, %v1664
    %v1755 = vpack.c.b16 %v1667, %v1666
    %v1756 = vpack.c.b16 %v1669, %v1668
    %v1757 = vpack.c.b16 %v1671, %v1670
    %v1758 = vpack.c.b16 %v1673, %v1672
    %v1759 = vpack.c.b16 %v1675, %v1674
    %v1760 = vpack.c.b16 %v1677, %v1676
    %v1761 = vpack.c.b16 %v1679, %v1678
    %v1762 = vpack.c.b16 %v1681, %v1680
    %v1763 = vpack.c.b16 %v1683, %v1682
    %v1764 = vpack.c.b16 %v1685, %v1684
    %v1765 = vpack.c.b16 %v1687, %v1686
    %v1766 = vpack.c.b16 %v1689, %v1688
    %v1767 = vpack.c.b16 %v1691, %v1690
    %v1768 = vpack.c.b16 %v1693, %v1692
    %v1769 = vpack.c.b16 %v1695, %v1694
    %v1770 = vpack.c.b16 %v1697, %v1696
    %v1771 = vpack.c.b16 %v1699, %v1698
    %v1772 = vpack.c.b16 %v1701, %v1700
    %v1773 = vpack.c.b16 %v1703, %v1702
    %v1774 = vpack.c.b16 %v1705, %v1704
    %v1775 = vpack.c.b16 %v1707, %v1706
    %v1776 = vpack.c.b16 %v1709, %v1708
    %v1777 = vpack.c.b16 %v1711, %v1710
    %v1778 = vpack.c.b16 %v1713, %v1712
    %v1779 = vpack.c.b16 %v1715, %v1714
    %v1780 = vpack.c.b16 %v1717, %v1716
    %v1781 = vpack.c.b16 %v1719, %v1718
    %v1782 = vpack.c.b16 %v1721, %v1720
    %v1783 = vpack.c.b16 %v1723, %v1722
    %v1784 = vpack.c.b16 %v1725, %v1724
    %v1785 = vpack.c.b16 %v1727, %v1726
    %v1786 = vpack.c.b16 %v1729, %v1728
    %v1787 = vpack.c.b16 %v1731, %v1730
    %v1788 = vpack.c.b16 %v1733, %v1732
    %v1789 = vpack.c.b16 %v1735, %v1734
    %v1790 = vpack.c.b16 %v1737, %v1736
    %v1791 = vpack.c.b16 %v1739, %v1738
    %v1792 = vpack.c.b16 %v1741, %v1740
    %v1793 = vpack.c.b16 %v1743, %v1742
    %v1794 = vpack.c.b16 %v1745, %v1744
    %v1795 = vpack.c.b16 %v1747, %v1746
    %1844 = vmatprep.subr.bf16.mxu0 0
    %1845 = vmatpush1.bf16.msra.mxu0 %v1748
    %1846 = vmatprep.subr.bf16.mxu0 0
    %1847 = vmatpush1.bf16.msra.mxu0 %v1749
    %1848 = vmatprep.subr.bf16.mxu0 0
    %1849 = vmatpush1.bf16.msra.mxu0 %v1750
    %1850 = vmatprep.subr.bf16.mxu0 0
    %1851 = vmatpush1.bf16.msra.mxu0 %v1751
    %1852 = vmatprep.subr.bf16.mxu0 0
    %1853 = vmatpush1.bf16.msra.mxu0 %v1752
    %1854 = vmatprep.subr.bf16.mxu0 0
    %1855 = vmatpush1.bf16.msra.mxu0 %v1753
    %1856 = vmatprep.subr.bf16.mxu0 0
    %1857 = vmatpush1.bf16.msra.mxu0 %v1754
    %1858 = vmatprep.subr.bf16.mxu0 0
    %1859 = vmatpush1.bf16.msra.mxu0 %v1755
    %1860 = vmatprep.subr.bf16.mxu0 0
    %1861 = vmatpush1.bf16.msra.mxu0 %v1756
    %1862 = vmatprep.subr.bf16.mxu0 0
    %1863 = vmatpush1.bf16.msra.mxu0 %v1757
    %1864 = vmatprep.subr.bf16.mxu0 0
    %1865 = vmatpush1.bf16.msra.mxu0 %v1758
    %1866 = vmatprep.subr.bf16.mxu0 0
    %1867 = vmatpush1.bf16.msra.mxu0 %v1759
    %1868 = vmatprep.subr.bf16.mxu0 0
    %1869 = vmatpush1.bf16.msra.mxu0 %v1760
    %1870 = vmatprep.subr.bf16.mxu0 0
    %1871 = vmatpush1.bf16.msra.mxu0 %v1761
    %1872 = vmatprep.subr.bf16.mxu0 0
    %1873 = vmatpush1.bf16.msra.mxu0 %v1762
    %1874 = vmatprep.subr.bf16.mxu0 0
    %1875 = vmatpush1.bf16.msra.mxu0 %v1763
    %1876 = vmatprep.mubr.bf16.mxu0 %v1432
    %1877 = vmatmul.mubr.bf16.gmra.mrb[0].mxu0 %v1431
    %v1878 = vpop.f32.mrb[0].mxu0
    %v1879 = vadd.f32 %v1554, %v1878
    %v1880 = vpop.f32.mrb[0].mxu0
    %v1881 = vpop.f32.mrb[0].mxu0
    %v1882 = vadd.f32 %v1554, %v1881
    %v1883 = vpop.f32.mrb[0].mxu0
    %1884 = vdwg.mxu0
    %1885 = vmatprep.subr.bf16.mxu0 0
    %1886 = vmatpush1.bf16.msra.mxu0 %v1764
    %1887 = vmatprep.subr.bf16.mxu0 0
    %1888 = vmatpush1.bf16.msra.mxu0 %v1765
    %1889 = vmatprep.subr.bf16.mxu0 0
    %1890 = vmatpush1.bf16.msra.mxu0 %v1766
    %1891 = vmatprep.subr.bf16.mxu0 0
    %1892 = vmatpush1.bf16.msra.mxu0 %v1767
    %1893 = vmatprep.subr.bf16.mxu0 0
    %1894 = vmatpush1.bf16.msra.mxu0 %v1768
    %1895 = vmatprep.subr.bf16.mxu0 0
    %1896 = vmatpush1.bf16.msra.mxu0 %v1769
    %1897 = vmatprep.subr.bf16.mxu0 0
    %1898 = vmatpush1.bf16.msra.mxu0 %v1770
    %1899 = vmatprep.subr.bf16.mxu0 0
    %1900 = vmatpush1.bf16.msra.mxu0 %v1771
    %1901 = vmatprep.subr.bf16.mxu0 0
    %1902 = vmatpush1.bf16.msra.mxu0 %v1772
    %1903 = vmatprep.subr.bf16.mxu0 0
    %1904 = vmatpush1.bf16.msra.mxu0 %v1773
    %1905 = vmatprep.subr.bf16.mxu0 0
    %1906 = vmatpush1.bf16.msra.mxu0 %v1774
    %1907 = vmatprep.subr.bf16.mxu0 0
    %1908 = vmatpush1.bf16.msra.mxu0 %v1775
    %1909 = vmatprep.subr.bf16.mxu0 0
    %1910 = vmatpush1.bf16.msra.mxu0 %v1776
    %1911 = vmatprep.subr.bf16.mxu0 0
    %1912 = vmatpush1.bf16.msra.mxu0 %v1777
    %1913 = vmatprep.subr.bf16.mxu0 0
    %1914 = vmatpush1.bf16.msra.mxu0 %v1778
    %1915 = vmatprep.subr.bf16.mxu0 0
    %1916 = vmatpush1.bf16.msra.mxu0 %v1779
    %1917 = vmatprep.mubr.bf16.mxu0 %v1442
    %1918 = vmatmul.mubr.bf16.gmra.mrb[0].mxu0 %v1441
    %v1919 = vpop.f32.mrb[0].mxu0
    %v1920 = vadd.f32 %v1879, %v1919
    %v1921 = vpop.f32.mrb[0].mxu0
    %v1922 = vpop.f32.mrb[0].mxu0
    %v1923 = vadd.f32 %v1882, %v1922
    %v1924 = vpop.f32.mrb[0].mxu0
    %1925 = vdwg.mxu0
    %1926 = vmatprep.subr.bf16.mxu0 0
    %1927 = vmatpush1.bf16.msra.mxu0 %v1780
    %1928 = vmatprep.subr.bf16.mxu0 0
    %1929 = vmatpush1.bf16.msra.mxu0 %v1781
    %1930 = vmatprep.subr.bf16.mxu0 0
    %1931 = vmatpush1.bf16.msra.mxu0 %v1782
    %1932 = vmatprep.subr.bf16.mxu0 0
    %1933 = vmatpush1.bf16.msra.mxu0 %v1783
    %1934 = vmatprep.subr.bf16.mxu0 0
    %1935 = vmatpush1.bf16.msra.mxu0 %v1784
    %1936 = vmatprep.subr.bf16.mxu0 0
    %1937 = vmatpush1.bf16.msra.mxu0 %v1785
    %1938 = vmatprep.subr.bf16.mxu0 0
    %1939 = vmatpush1.bf16.msra.mxu0 %v1786
    %1940 = vmatprep.subr.bf16.mxu0 0
    %1941 = vmatpush1.bf16.msra.mxu0 %v1787
    %1942 = vmatprep.subr.bf16.mxu0 0
    %1943 = vmatpush1.bf16.msra.mxu0 %v1788
    %1944 = vmatprep.subr.bf16.mxu0 0
    %1945 = vmatpush1.bf16.msra.mxu0 %v1789
    %1946 = vmatprep.subr.bf16.mxu0 0
    %1947 = vmatpush1.bf16.msra.mxu0 %v1790
    %1948 = vmatprep.subr.bf16.mxu0 0
    %1949 = vmatpush1.bf16.msra.mxu0 %v1791
    %1950 = vmatprep.subr.bf16.mxu0 0
    %1951 = vmatpush1.bf16.msra.mxu0 %v1792
    %1952 = vmatprep.subr.bf16.mxu0 0
    %1953 = vmatpush1.bf16.msra.mxu0 %v1793
    %1954 = vmatprep.subr.bf16.mxu0 0
    %1955 = vmatpush1.bf16.msra.mxu0 %v1794
    %1956 = vmatprep.subr.bf16.mxu0 0
    %1957 = vmatpush1.bf16.msra.mxu0 %v1795
    %1958 = vmatprep.mubr.bf16.mxu0 %v1452
    %1959 = vmatmul.mubr.bf16.gmra.mrb[0].mxu0 %v1451
    %v1960 = vpop.f32.mrb[0].mxu0
    %v1961 = vadd.f32 %v1920, %v1960
    %v1962 = vpop.f32.mrb[0].mxu0
    %v1963 = vpop.f32.mrb[0].mxu0
    %v1964 = vadd.f32 %v1923, %v1963
    %v1965 = vpop.f32.mrb[0].mxu0
    %1966 = vdwg.mxu0
    %v1967 = vld [vmem:[%s0] sm:$0xff]
    %v1968 = vld [vmem:[%s0 + $0x8] sm:$0xff]
    %v1969 = vadd.f32 %v1961, %v1967
    %v1970 = vadd.f32 %v1964, %v1968
    %v1973 = vcombine.high %v1969, %v1969
    %v1975 = vunpack.c.l.s4 1983009808
    %v1976 = vunpack.c.0.s8 %v1975
    %v1977 = vlaneseq
    %v1978 = vshrl.u32 %v1977, 7
    %v1979 = vsub.s32 %v1976, %v1978
    %v1980 = vrot.slane %v1969, %v1979
    %v1982 = vunpack.c.l.s4 1983009808
    %v1983 = vunpack.c.0.s8 %v1982
    %v1984 = vlaneseq
    %v1985 = vshrl.u32 %v1984, 7
    %v1986 = vsub.s32 %v1983, %v1985
    %v1987 = vrot.slane %v1973, %v1986
    %v1988 = vcombine.high %v1980, %v1980
    %v1989 = vcombine.high %v1987, %v1987
    %v1990 = vcombine.high %v1970, %v1970
    %v1992 = vunpack.c.l.s4 1983009808
    %v1993 = vunpack.c.0.s8 %v1992
    %v1994 = vlaneseq
    %v1995 = vshrl.u32 %v1994, 7
    %v1996 = vsub.s32 %v1993, %v1995
    %v1997 = vrot.slane %v1970, %v1996
    %v1999 = vunpack.c.l.s4 1983009808
    %v2000 = vunpack.c.0.s8 %v1999
    %v2001 = vlaneseq
    %v2002 = vshrl.u32 %v2001, 7
    %v2003 = vsub.s32 %v2000, %v2002
    %v2004 = vrot.slane %v1990, %v2003
    %v2005 = vcombine.high %v1997, %v1997
    %v2006 = vcombine.high %v2004, %v2004
    %vm2015 = vcmask 1041408
    %v2016 = vsel %vm2015, %v1980, 0.0
    %v2017 = vsel %vm2015, %v1988, 0.0
    %v2018 = vadd.f32 %v2016, %v2017
    %v2019 = vsel %vm2015, %v1987, 0.0
    %v2020 = vadd.f32 %v2018, %v2019
    %v2021 = vsel %vm2015, %v1989, 0.0
    %v2022 = vadd.f32 %v2020, %v2021
    %v2023 = vsel %vm2015, %v1997, 0.0
    %v2024 = vadd.f32 %v2022, %v2023
    %v2025 = vsel %vm2015, %v2005, 0.0
    %v2026 = vadd.f32 %v2024, %v2025
    %v2027 = vsel %vm2015, %v2004, 0.0
    %v2028 = vadd.f32 %v2026, %v2027
    %v2029 = vsel %vm2015, %v2006, 0.0
    %v2030 = vadd.f32 %v2028, %v2029
    %v2031 = vrcp.pop 8.0
    %v2032 = vmul.f32 %v2030, %v2031
    %v2033 = vmul.f32 %v2032, %v2032
    %v2034 = vsel %vm2015, %v2033, 0.0
    %2035 = vadd.xlane.f32.xlu0 %v2034
    %v2036 = vpop.xlane.xlu0 %2035
    %v2037 = vrsqrt.pop %v2036
    %v2038 = vmin.f32 %v2037, 10000.0
    %v2039 = vmul.f32 %v2032, %v2038
    %2040 = vst [vmem:[#allocation8] sm:$0x3] %v2039
    %v2041 = vmul.f32 %v1969, %v1969
    %v2042 = vmul.f32 %v1970, %v1970
    %2043 = vadd.xlane.f32.xlu0 %v2041
    %v2044 = vpop.xlane.xlu0 %2043
    %2045 = vadd.xlane.f32.xlu0 %v2042
    %v2046 = vpop.xlane.xlu0 %2045
    %v2047 = vrsqrt.pop %v2044
    %v2048 = vrsqrt.pop %v2046
    %v2049 = vmin.f32 %v2047, 10000.0
    %v2050 = vmin.f32 %v2048, 10000.0
    %v2051 = vmul.f32 %v1969, %v2049
    %v2052 = vmul.f32 %v1970, %v2050
    %2053 = vst [vmem:[%s16] sm:$0xff] %v2051
    %2054 = vst [vmem:[%s16 + $0x8] sm:$0xff] %v2052
    // Predicated region
    $region62: #{parti_forward.1} parent=1 // pred_check
      _
    $region63: #{parti_forward.1} parent=1 // pred_check_branch
      %2056 = sbr.rel (0) target = $region65
    $region64: #{parti_forward.1} parent=1 // pred_region
      _
    $region65: #{parti_forward.1} parent=1 // pred_fallthru
      _
    // Predicated region
    $region66: #{parti_forward.1} parent=1 // pred_check
      _
    $region67: #{parti_forward.1} parent=1 // pred_check_branch
      %2058 = sbr.rel (0) target = $region69
    $region68: #{parti_forward.1} parent=1 // pred_region
      %s2060 = ssub.s32 32, 32
      %2061 = vsyncadd [#allocation7], %s2060
      %s2063 = sshll.u32 [#allocation8], 4
      %s2064 = int_to_ptr.vmem [resolvable:$true] %s2063
      %2066 = dma.vmem_to_hbm [thread:$0]  %s2064, 32, %s17, [#allocation7]
    $region69: #{parti_forward.1} parent=1 // pred_fallthru
      _
    // Predicated region
    $region70: #{parti_forward.1} parent=1 // pred_check
      _
    $region71: #{parti_forward.1} parent=1 // pred_check_branch
      %2068 = sbr.rel (0) target = $region73
    $region72: #{parti_forward.1} parent=1 // pred_region
      _
    $region73: #{parti_forward.1} parent=1 // pred_fallthru
      _
    // Predicated region
    $region74: #{parti_forward.1} parent=1 // pred_check
      _
    $region75: #{parti_forward.1} parent=1 // pred_check_branch
      %2070 = sbr.rel (0) target = $region77
    $region76: #{parti_forward.1} parent=1 // pred_region
      %2071 = dma.done [#allocation7], 32
    $region77: #{parti_forward.1} parent=1 // pred_fallthru
      _
    %2072 = vsyncpa [#allocation6], 1
    %2073 = vsyncpa [#allocation7], 1
  %2074 = vsyncmov [#allocation4]
  %s2075 = vpop.sfrf %2074
  %p2076 = scmp.eq.s32.totalorder %s2075, 0
  %p2077 = pneg %p2076
  %2079 = shalt.err (%p2077)
  %s2080 = scalar_lea.sflag [#allocation4], 1
  %2081 = vsyncmov %s2080
  %s2082 = vpop.sfrf %2081
  %p2083 = scmp.eq.s32.totalorder %s2082, 0
  %p2084 = pneg %p2083
  %2086 = shalt.err (%p2084)

</llo_original>
